<compile_context>
chip_gen: v7x
topology: tpu7x:2x2x1
jax: 0.10.0
libtpu: 0.0.40
codegen_flags: <defaults>
</compile_context>

<pallas_src>
import functools

import numpy as np
import jax
import jax.numpy as jnp
from jax import lax
from jax.experimental import pallas as pl
from jax.experimental.pallas import tpu as pltpu


def _largest_divisor_leq(n, target):
    t = max(1, min(n, int(target)))
    while n % t != 0:
        t -= 1
    return t


def _round_up(n, m):
    return ((n + m - 1) // m) * m


# ---------------------------------------------------------------------------
# Fused kernel: streaming per-group max/mean over agents + Conv3d(2->1, k=3,
# pad=1) + ReLU, grid = (channel tile, flat agent index).
# ---------------------------------------------------------------------------
def _sada_fused_kernel(gid_ref, len_ref, w_ref, b_ref, *refs, has_halo):
    # gid_ref : SMEM int32[N]   per-agent group id (scalar prefetch)
    # len_ref : SMEM int32[B]   per-group agent count (scalar prefetch)
    # w_ref   : SMEM f32[54]    Conv3d weight (1, 2, 3, 3, 3) flattened
    # b_ref   : SMEM f32[1]
    # refs    : ([lo], mid, [hi], out, max_scratch, sum_scratch)
    if has_halo:
        lo_ref, mid_ref, hi_ref, out_ref, max_ref, sum_ref = refs
    else:
        mid_ref, out_ref, max_ref, sum_ref = refs
        lo_ref = hi_ref = None

    c = pl.program_id(0)
    l = pl.program_id(1)
    n_ctiles = pl.num_programs(0)
    n_agents = pl.num_programs(1)

    _, TC, H, W = mid_ref.shape
    f32 = jnp.float32

    g = gid_ref[l]
    is_first = jnp.logical_or(l == 0, gid_ref[jnp.maximum(l - 1, 0)] != g)
    is_last = jnp.logical_or(l == n_agents - 1,
                             gid_ref[jnp.minimum(l + 1, n_agents - 1)] != g)

    mid = mid_ref[0]                                    # (TC, H, W)

    # -------- phase 1/2: streaming max / sum, slice-wise (no concat copy) ---
    @pl.when(is_first)
    def _start_group():
        max_ref[pl.ds(1, TC), :, :] = mid
        sum_ref[pl.ds(1, TC), :, :] = mid
        if has_halo:
            lo = lo_ref[0]
            hi = hi_ref[0]
            max_ref[pl.ds(0, 1), :, :] = lo
            sum_ref[pl.ds(0, 1), :, :] = lo
            max_ref[pl.ds(TC + 1, 1), :, :] = hi
            sum_ref[pl.ds(TC + 1, 1), :, :] = hi

    @pl.when(jnp.logical_not(is_first))
    def _accumulate():
        max_ref[pl.ds(1, TC), :, :] = jnp.maximum(max_ref[pl.ds(1, TC), :, :], mid)
        sum_ref[pl.ds(1, TC), :, :] = sum_ref[pl.ds(1, TC), :, :] + mid
        if has_halo:
            lo = lo_ref[0]
            hi = hi_ref[0]
            max_ref[pl.ds(0, 1), :, :] = jnp.maximum(max_ref[pl.ds(0, 1), :, :], lo)
            sum_ref[pl.ds(0, 1), :, :] = sum_ref[pl.ds(0, 1), :, :] + lo
            max_ref[pl.ds(TC + 1, 1), :, :] = jnp.maximum(
                max_ref[pl.ds(TC + 1, 1), :, :], hi)
            sum_ref[pl.ds(TC + 1, 1), :, :] = sum_ref[pl.ds(TC + 1, 1), :, :] + hi

    # -------- depth zero padding: only the 2 halo planes are touched --------
    zplane = jnp.zeros((1, H, W), f32)

    @pl.when(jnp.logical_and(is_last, c == 0))
    def _zero_lo_halo():
        max_ref[pl.ds(0, 1), :, :] = zplane
        sum_ref[pl.ds(0, 1), :, :] = zplane

    @pl.when(jnp.logical_and(is_last, c == n_ctiles - 1))
    def _zero_hi_halo():
        max_ref[pl.ds(TC + 1, 1), :, :] = zplane
        sum_ref[pl.ds(TC + 1, 1), :, :] = zplane

    # -------- phase 3: last agent of group -> Conv3d(2->1) + ReLU -----------
    @pl.when(is_last)
    def _conv_relu():
        # Fold the 1/len mean normalization into the 27 taps of conv input
        # channel 1 (scalar multiplies) instead of a full-tile multiply.
        inv_n = 1.0 / len_ref[g].astype(f32)

        x_max = max_ref[...]                            # (TC + 2, H, W)
        x_sum = sum_ref[...]
        x_in = (x_max, x_sum)

        zrow = jnp.zeros((TC, 1, W), f32)
        zcol = jnp.zeros((TC, H, 1), f32)

        def shift_h(p, s):      # zero-filled shift along H (sublane axis)
            if s == 0:
                return p
            if s > 0:
                return jnp.concatenate([zrow, p[:, :-1, :]], axis=1)
            return jnp.concatenate([p[:, 1:, :], zrow], axis=1)

        def shift_w(p, s):      # zero-filled shift along W (lane axis)
            if s == 0:
                return p
            if s > 0:
                return jnp.concatenate([zcol, p[:, :, :-1]], axis=2)
            return jnp.concatenate([p[:, :, 1:], zcol], axis=2)

        # TODO(synk): pltpu.roll(+boundary mask) would move these 8 shifts to
        # the XLU slot; kept as concat shifts for lowering safety when W is
        # not a multiple of 128.
        # TODO(synk): bf16 tap accumulation on v6e/v7x (2x VPU packing); kept
        # f32 to stay bit-close to the f32 reference and for v5e (no bf16 VPU).
        #
        # 54 taps: every read is a channel-axis (aligned) slice; the +/-1
        # spatial shifts are applied to fused per-(kh)/(kw) partial sums and a
        # single running accumulator (at most ~3 live (TC,H,W) planes).
        acc = None
        for kw in range(3):
            aw = None
            for kh in range(3):
                p = None
                for ci in range(2):
                    for kd in range(3):
                        wv = w_ref[ci * 27 + kd * 9 + kh * 3 + kw]
                        if ci == 1:
                            wv = wv * inv_n
                        term = wv * x_in[ci][kd:kd + TC]
                        p = term if p is None else p + term
                ph = shift_h(p, 1 - kh)
                aw = ph if aw is None else aw + ph
            aww = shift_w(aw, 1 - kw)
            acc = aww if acc is None else acc + aww

        out_ref[0] = jnp.maximum(acc + b_ref[0], 0.0)


# ---------------------------------------------------------------------------
# Wrapper: builds the grid / BlockSpecs and calls the fused kernel.
# ---------------------------------------------------------------------------
def sada_fusion_forward(x, record_len, w, bias, *,
                        tile_c=None,
                        min_c_tiles=1,
                        vmem_budget_bytes=30 * 1024 * 1024,
                        vmem_limit_bytes=None):
    """Fused SAdaFusion forward.  record_len must be static host metadata.

    min_c_tiles: set to 2 on v7x (2 TensorCores) so the 'parallel' channel-tile
      grid axis spans both cores; keep 1 on v5e/v6e.
    vmem_budget_bytes: TC auto-sizing budget; ~30 MiB is v7x-safe, can be
      raised towards ~90 MiB on v5e/v6e (128 MiB VMEM) for larger tiles.
    """
    x = jnp.asarray(x, jnp.float32)
    N, C, H, W = x.shape
    record_len = np.asarray(record_len, dtype=np.int64)
    assert record_len.ndim == 1 and record_len.min() >= 1
    assert int(record_len.sum()) == N
    B = int(record_len.shape[0])

    # Host-side group metadata, scalar-prefetched into SMEM.
    gid = jnp.asarray(np.repeat(np.arange(B, dtype=np.int32),
                                record_len.astype(np.int64)))
    lens = jnp.asarray(record_len.astype(np.int32))

    # Optional lane/sublane padding so vregs and stores are dense.  H padding
    # is cheap (<= 7 rows); W is only padded when W > 128 so the extra copy of
    # x never blows up small feature maps.  Conv zero-padding semantics are
    # preserved because the pad region is zero for every agent.
    Hp = _round_up(H, 8) if H % 8 else H
    Wp = _round_up(W, 128) if (W % 128 and W > 128) else W
    if (Hp, Wp) != (H, W):
        x = jnp.pad(x, ((0, 0), (0, 0), (0, Hp - H), (0, Wp - W)))

    plane = Hp * Wp * 4

    # Channel tile from the VMEM budget: usage ~ plane * (12*TC + 24)
    # (double-buffered mid in + out, halos, 2 scratch accumulators, conv temps).
    if tile_c is None:
        tile_c = max(1, (vmem_budget_bytes // plane - 24) // 12)
    TC = _largest_divisor_leq(C, tile_c)
    if min_c_tiles > 1:
        TC = _largest_divisor_leq(C, min(TC, max(1, C // min_c_tiles)))
    n_ctiles = C // TC
    has_halo = n_ctiles > 1   # untiled-C fast path drops the halo BlockSpecs

    w_flat = jnp.asarray(w, jnp.float32).reshape(-1)      # (54,)
    b_flat = jnp.asarray(bias, jnp.float32).reshape(-1)   # (1,)

    def mid_map(c, l, gid_r, len_r):
        return (l, c, 0, 0)

    def lo_map(c, l, gid_r, len_r):
        return (l, jnp.maximum(c * TC - 1, 0), 0, 0)

    def hi_map(c, l, gid_r, len_r):
        return (l, jnp.minimum((c + 1) * TC, C - 1), 0, 0)

    def out_map(c, l, gid_r, len_r):
        return (gid_r[l], c, 0, 0)

    smem = pl.BlockSpec(memory_space=pltpu.MemorySpace.SMEM)
    in_specs = [smem, smem]            # conv weight, conv bias
    operands = [w_flat, b_flat]
    if has_halo:
        in_specs.append(pl.BlockSpec((1, 1, Hp, Wp), lo_map))   # halo below
        operands.append(x)
    # TODO(synk): if profiling shows exposed DMA on v5e, add
    # pipeline_mode=pl.Buffered(3) to this mid BlockSpec.
    in_specs.append(pl.BlockSpec((1, TC, Hp, Wp), mid_map))     # tile channels
    operands.append(x)
    if has_halo:
        in_specs.append(pl.BlockSpec((1, 1, Hp, Wp), hi_map))   # halo above
        operands.append(x)

    # VMEM limit from the actual block/scratch sizes (auto path stays <= ~40
    # MiB, safe for v7x's 64 MiB VMEM; grows only if tile_c is forced larger).
    est = plane * (4 * TC + (4 if has_halo else 0) + 8 * (TC + 2))
    if vmem_limit_bytes is None:
        vmem_limit_bytes = int(min(max(est * 13 // 10, 32 * 1024 * 1024),
                                   100 * 1024 * 1024))

    grid_spec = pltpu.PrefetchScalarGridSpec(
        num_scalar_prefetch=2,
        grid=(n_ctiles, N),
        in_specs=in_specs,
        out_specs=pl.BlockSpec((1, TC, Hp, Wp), out_map),
        scratch_shapes=[
            pltpu.VMEM((TC + 2, Hp, Wp), jnp.float32),   # running max
            pltpu.VMEM((TC + 2, Hp, Wp), jnp.float32),   # running sum
        ],
    )

    out = pl.pallas_call(
        functools.partial(_sada_fused_kernel, has_halo=has_halo),
        out_shape=jax.ShapeDtypeStruct((B, C, Hp, Wp), jnp.float32),
        grid_spec=grid_spec,
        compiler_params=pltpu.CompilerParams(
            dimension_semantics=("parallel", "arbitrary"),
            vmem_limit_bytes=vmem_limit_bytes,
        ),
    )(gid, lens, *operands)

    if (Hp, Wp) != (H, W):
        out = out[:, :, :H, :W]
    return out


# ---------------------------------------------------------------------------
# Pure-JAX reference for verification.
# ---------------------------------------------------------------------------
def sada_fusion_reference(x, record_len, w, bias):
    record_len = np.asarray(record_len)
    bounds = np.concatenate([[0], np.cumsum(record_len)])
    groups = []
    for b in range(len(record_len)):
        xx = x[int(bounds[b]):int(bounds[b + 1])]
        groups.append(jnp.stack([jnp.max(xx, axis=0), jnp.mean(xx, axis=0)], 0))
    stacked = jnp.stack(groups, axis=0)  # (B, 2, C, H, W)
    y = lax.conv_general_dilated(
        stacked, jnp.asarray(w, jnp.float32),
        window_strides=(1, 1, 1),
        padding=[(1, 1), (1, 1), (1, 1)],
        dimension_numbers=("NCDHW", "OIDHW", "NCDHW"))
    y = jnp.maximum(y + jnp.asarray(bias, jnp.float32).reshape(1, 1, 1, 1, 1), 0.0)
    return y[:, 0]


if __name__ == "__main__":
    key = jax.random.PRNGKey(0)
    k_x, k_w, k_b, k_x2 = jax.random.split(key, 4)

    # Deterministic synthetic Conv3d(2, 1, 3) parameters.
    w = jax.random.normal(k_w, (1, 2, 3, 3, 3), dtype=jnp.float32) * 0.1
    bias = jax.random.normal(k_b, (1,), dtype=jnp.float32) * 0.1

    # Case 1: ragged groups (2 and 3 agents), untiled-C fast path (no halos).
    record_len = [2, 3]
    N, C, H, W = sum(record_len), 4, 8, 16
    x = jax.random.normal(k_x, (N, C, H, W), dtype=jnp.float32)
    out = jax.block_until_ready(sada_fusion_forward(x, record_len, w, bias))
    ref = jax.block_until_ready(sada_fusion_reference(x, record_len, w, bias))
    np.testing.assert_allclose(np.asarray(out), np.asarray(ref),
                               rtol=1e-5, atol=1e-5)
    assert out.shape == (len(record_len), C, H, W)

    # Case 2: channel-tiled halo path (tile_c=2 -> boundary + interior tiles).
    out2 = jax.block_until_ready(
        sada_fusion_forward(x, record_len, w, bias, tile_c=2))
    np.testing.assert_allclose(np.asarray(out2), np.asarray(ref),
                               rtol=1e-5, atol=1e-5)

    # Case 3: unaligned spatial dims (H=10 -> 16, W=130 -> 256) exercise the
    # lane/sublane padding path, plus a length-1 group.
    record_len3 = [1, 2]
    x3 = jax.random.normal(k_x2, (sum(record_len3), 3, 10, 130),
                           dtype=jnp.float32)
    out3 = jax.block_until_ready(sada_fusion_forward(x3, record_len3, w, bias))
    ref3 = jax.block_until_ready(sada_fusion_reference(x3, record_len3, w, bias))
    np.testing.assert_allclose(np.asarray(out3), np.asarray(ref3),
                               rtol=1e-5, atol=1e-5)

    print("KERNEL_OK")
</pallas_src>

<mosaic_0001>
module attributes {stable_mosaic.version = 11 : i64} {
  func.func @_sada_fused_kernel(%arg0: i32, %arg1: i32, %arg2: memref<5xi32, #tpu.memory_space<smem>>, %arg3: memref<2xi32, #tpu.memory_space<smem>>, %arg4: memref<54xf32, #tpu.memory_space<smem>>, %arg5: memref<1xf32, #tpu.memory_space<smem>>, %arg6: memref<1x4x8x16xf32, #tpu.memory_space<vmem>>, %arg7: memref<1x4x8x16xf32, #tpu.memory_space<vmem>>, %arg8: memref<6x8x16xf32, #tpu.memory_space<vmem>>, %arg9: memref<6x8x16xf32, #tpu.memory_space<vmem>>) attributes {dimension_semantics = [#tpu.dimension_semantics<parallel>, #tpu.dimension_semantics<arbitrary>], iteration_bounds = array<i64: 1, 5>, scalar_prefetch = 2 : i64, scratch_operands = 2 : i64, tpu.core_type = #tpu.core_type<tc>, window_params = [{transform_indices = @transform_0, window_bounds = array<i64: 54>}, {transform_indices = @transform_1, window_bounds = array<i64: 1>}, {transform_indices = @transform_2, window_bounds = array<i64: 1, 4, 8, 16>}, {transform_indices = @transform_3, window_bounds = array<i64: 1, 4, 8, 16>}]} {
    %0 = arith.index_cast %arg1 : i32 to index
    %1 = memref.load %arg2[%0] : memref<5xi32, #tpu.memory_space<smem>>
    %c0_i32 = arith.constant 0 : i32
    %2 = arith.cmpi eq, %arg1, %c0_i32 : i32
    %c1_i32 = arith.constant 1 : i32
    %3 = arith.subi %arg1, %c1_i32 : i32
    %c0_i32_0 = arith.constant 0 : i32
    %4 = arith.maxsi %3, %c0_i32_0 : i32
    %5 = arith.index_cast %4 : i32 to index
    %6 = memref.load %arg2[%5] : memref<5xi32, #tpu.memory_space<smem>>
    %7 = arith.cmpi ne, %6, %1 : i32
    %8 = arith.ori %2, %7 : i1
    %c4_i32 = arith.constant 4 : i32
    %9 = arith.cmpi eq, %arg1, %c4_i32 : i32
    %c1_i32_1 = arith.constant 1 : i32
    %10 = arith.addi %arg1, %c1_i32_1 : i32
    %c4_i32_2 = arith.constant 4 : i32
    %11 = arith.minsi %10, %c4_i32_2 : i32
    %12 = arith.index_cast %11 : i32 to index
    %13 = memref.load %arg2[%12] : memref<5xi32, #tpu.memory_space<smem>>
    %14 = arith.cmpi ne, %13, %1 : i32
    %15 = arith.ori %9, %14 : i1
    %c0 = arith.constant 0 : index
    %c0_3 = arith.constant 0 : index
    %c0_4 = arith.constant 0 : index
    %c0_5 = arith.constant 0 : index
    %16 = vector.load %arg6[%c0, %c0_3, %c0_4, %c0_5] : memref<1x4x8x16xf32, #tpu.memory_space<vmem>>, vector<1x4x8x16xf32>
    %17 = vector.shape_cast %16 : vector<1x4x8x16xf32> to vector<4x8x16xf32>
    %18 = arith.extui %8 : i1 to i32
    %c0_i32_6 = arith.constant 0 : i32
    %19 = arith.cmpi ne, %18, %c0_i32_6 : i32
    scf.if %19 {
      %c1 = arith.constant 1 : index
      %c0_13 = arith.constant 0 : index
      %c0_14 = arith.constant 0 : index
      %34 = vector.load %arg8[%c1, %c0_13, %c0_14] : memref<6x8x16xf32, #tpu.memory_space<vmem>>, vector<4x8x16xf32>
      tpu.vector_store %arg8[%c1, %c0_13, %c0_14], %17 {strides = array<i32>} : memref<6x8x16xf32, #tpu.memory_space<vmem>>, vector<4x8x16xf32>,
      %c1_15 = arith.constant 1 : index
      %c0_16 = arith.constant 0 : index
      %c0_17 = arith.constant 0 : index
      %35 = vector.load %arg9[%c1_15, %c0_16, %c0_17] : memref<6x8x16xf32, #tpu.memory_space<vmem>>, vector<4x8x16xf32>
      tpu.vector_store %arg9[%c1_15, %c0_16, %c0_17], %17 {strides = array<i32>} : memref<6x8x16xf32, #tpu.memory_space<vmem>>, vector<4x8x16xf32>,
    } else {
    }
    %true = arith.constant true
    %20 = arith.xori %8, %true : i1
    %21 = arith.extui %20 : i1 to i32
    %c0_i32_7 = arith.constant 0 : i32
    %22 = arith.cmpi ne, %21, %c0_i32_7 : i32
    scf.if %22 {
      %c1 = arith.constant 1 : index
      %c0_13 = arith.constant 0 : index
      %c0_14 = arith.constant 0 : index
      %34 = vector.load %arg8[%c1, %c0_13, %c0_14] : memref<6x8x16xf32, #tpu.memory_space<vmem>>, vector<4x8x16xf32>
      %35 = arith.maximumf %34, %17 : vector<4x8x16xf32>
      %c1_15 = arith.constant 1 : index
      %c0_16 = arith.constant 0 : index
      %c0_17 = arith.constant 0 : index
      %36 = vector.load %arg8[%c1_15, %c0_16, %c0_17] : memref<6x8x16xf32, #tpu.memory_space<vmem>>, vector<4x8x16xf32>
      tpu.vector_store %arg8[%c1_15, %c0_16, %c0_17], %35 {strides = array<i32>} : memref<6x8x16xf32, #tpu.memory_space<vmem>>, vector<4x8x16xf32>,
      %c1_18 = arith.constant 1 : index
      %c0_19 = arith.constant 0 : index
      %c0_20 = arith.constant 0 : index
      %37 = vector.load %arg9[%c1_18, %c0_19, %c0_20] : memref<6x8x16xf32, #tpu.memory_space<vmem>>, vector<4x8x16xf32>
      %38 = arith.addf %37, %17 : vector<4x8x16xf32>
      %c1_21 = arith.constant 1 : index
      %c0_22 = arith.constant 0 : index
      %c0_23 = arith.constant 0 : index
      %39 = vector.load %arg9[%c1_21, %c0_22, %c0_23] : memref<6x8x16xf32, #tpu.memory_space<vmem>>, vector<4x8x16xf32>
      tpu.vector_store %arg9[%c1_21, %c0_22, %c0_23], %38 {strides = array<i32>} : memref<6x8x16xf32, #tpu.memory_space<vmem>>, vector<4x8x16xf32>,
    } else {
    }
    %cst = arith.constant 0.000000e+00 : f32
    %23 = vector.broadcast %cst : f32 to vector<1x8x16xf32>
    %c0_i32_8 = arith.constant 0 : i32
    %24 = arith.cmpi eq, %arg0, %c0_i32_8 : i32
    %25 = arith.andi %15, %24 : i1
    %26 = arith.extui %25 : i1 to i32
    %c0_i32_9 = arith.constant 0 : i32
    %27 = arith.cmpi ne, %26, %c0_i32_9 : i32
    scf.if %27 {
      %c0_13 = arith.constant 0 : index
      %c0_14 = arith.constant 0 : index
      %c0_15 = arith.constant 0 : index
      %34 = vector.load %arg8[%c0_13, %c0_14, %c0_15] : memref<6x8x16xf32, #tpu.memory_space<vmem>>, vector<1x8x16xf32>
      tpu.vector_store %arg8[%c0_13, %c0_14, %c0_15], %23 {strides = array<i32>} : memref<6x8x16xf32, #tpu.memory_space<vmem>>, vector<1x8x16xf32>,
      %c0_16 = arith.constant 0 : index
      %c0_17 = arith.constant 0 : index
      %c0_18 = arith.constant 0 : index
      %35 = vector.load %arg9[%c0_16, %c0_17, %c0_18] : memref<6x8x16xf32, #tpu.memory_space<vmem>>, vector<1x8x16xf32>
      tpu.vector_store %arg9[%c0_16, %c0_17, %c0_18], %23 {strides = array<i32>} : memref<6x8x16xf32, #tpu.memory_space<vmem>>, vector<1x8x16xf32>,
    } else {
    }
    %c0_i32_10 = arith.constant 0 : i32
    %28 = arith.cmpi eq, %arg0, %c0_i32_10 : i32
    %29 = arith.andi %15, %28 : i1
    %30 = arith.extui %29 : i1 to i32
    %c0_i32_11 = arith.constant 0 : i32
    %31 = arith.cmpi ne, %30, %c0_i32_11 : i32
    scf.if %31 {
      %c5 = arith.constant 5 : index
      %c0_13 = arith.constant 0 : index
      %c0_14 = arith.constant 0 : index
      %34 = vector.load %arg8[%c5, %c0_13, %c0_14] : memref<6x8x16xf32, #tpu.memory_space<vmem>>, vector<1x8x16xf32>
      tpu.vector_store %arg8[%c5, %c0_13, %c0_14], %23 {strides = array<i32>} : memref<6x8x16xf32, #tpu.memory_space<vmem>>, vector<1x8x16xf32>,
      %c5_15 = arith.constant 5 : index
      %c0_16 = arith.constant 0 : index
      %c0_17 = arith.constant 0 : index
      %35 = vector.load %arg9[%c5_15, %c0_16, %c0_17] : memref<6x8x16xf32, #tpu.memory_space<vmem>>, vector<1x8x16xf32>
      tpu.vector_store %arg9[%c5_15, %c0_16, %c0_17], %23 {strides = array<i32>} : memref<6x8x16xf32, #tpu.memory_space<vmem>>, vector<1x8x16xf32>,
    } else {
    }
    %32 = arith.extui %15 : i1 to i32
    %c0_i32_12 = arith.constant 0 : i32
    %33 = arith.cmpi ne, %32, %c0_i32_12 : i32
    scf.if %33 {
      %34 = arith.index_cast %1 : i32 to index
      %35 = memref.load %arg3[%34] : memref<2xi32, #tpu.memory_space<smem>>
      %36 = arith.sitofp %35 : i32 to f32
      %cst_13 = arith.constant 1.000000e+00 : f32
      %37 = arith.divf %cst_13, %36 : f32
      %c0_14 = arith.constant 0 : index
      %c0_15 = arith.constant 0 : index
      %c0_16 = arith.constant 0 : index
      %38 = vector.load %arg8[%c0_14, %c0_15, %c0_16] : memref<6x8x16xf32, #tpu.memory_space<vmem>>, vector<6x8x16xf32>
      %c0_17 = arith.constant 0 : index
      %c0_18 = arith.constant 0 : index
      %c0_19 = arith.constant 0 : index
      %39 = vector.load %arg9[%c0_17, %c0_18, %c0_19] : memref<6x8x16xf32, #tpu.memory_space<vmem>>, vector<6x8x16xf32>
      %cst_20 = arith.constant 0.000000e+00 : f32
      %40 = vector.broadcast %cst_20 : f32 to vector<4x1x16xf32>
      %cst_21 = arith.constant 0.000000e+00 : f32
      %41 = vector.broadcast %cst_21 : f32 to vector<4x8x1xf32>
      %c0_22 = arith.constant 0 : index
      %42 = memref.load %arg4[%c0_22] : memref<54xf32, #tpu.memory_space<smem>>
      %43 = vector.extract_strided_slice %38 {offsets = [0, 0, 0], sizes = [4, 8, 16], strides = [1, 1, 1]} : vector<6x8x16xf32> to vector<4x8x16xf32>
      %44 = vector.broadcast %42 : f32 to vector<4x8x16xf32>
      %45 = arith.mulf %44, %43 : vector<4x8x16xf32>
      %c9 = arith.constant 9 : index
      %46 = memref.load %arg4[%c9] : memref<54xf32, #tpu.memory_space<smem>>
      %47 = vector.extract_strided_slice %38 {offsets = [1, 0, 0], sizes = [4, 8, 16], strides = [1, 1, 1]} : vector<6x8x16xf32> to vector<4x8x16xf32>
      %48 = vector.broadcast %46 : f32 to vector<4x8x16xf32>
      %49 = arith.mulf %48, %47 : vector<4x8x16xf32>
      %50 = arith.addf %45, %49 : vector<4x8x16xf32>
      %c18 = arith.constant 18 : index
      %51 = memref.load %arg4[%c18] : memref<54xf32, #tpu.memory_space<smem>>
      %52 = vector.extract_strided_slice %38 {offsets = [2, 0, 0], sizes = [4, 8, 16], strides = [1, 1, 1]} : vector<6x8x16xf32> to vector<4x8x16xf32>
      %53 = vector.broadcast %51 : f32 to vector<4x8x16xf32>
      %54 = arith.mulf %53, %52 : vector<4x8x16xf32>
      %55 = arith.addf %50, %54 : vector<4x8x16xf32>
      %c27 = arith.constant 27 : index
      %56 = memref.load %arg4[%c27] : memref<54xf32, #tpu.memory_space<smem>>
      %57 = arith.mulf %56, %37 : f32
      %58 = vector.extract_strided_slice %39 {offsets = [0, 0, 0], sizes = [4, 8, 16], strides = [1, 1, 1]} : vector<6x8x16xf32> to vector<4x8x16xf32>
      %59 = vector.broadcast %57 : f32 to vector<4x8x16xf32>
      %60 = arith.mulf %59, %58 : vector<4x8x16xf32>
      %61 = arith.addf %55, %60 : vector<4x8x16xf32>
      %c36 = arith.constant 36 : index
      %62 = memref.load %arg4[%c36] : memref<54xf32, #tpu.memory_space<smem>>
      %63 = arith.mulf %62, %37 : f32
      %64 = vector.extract_strided_slice %39 {offsets = [1, 0, 0], sizes = [4, 8, 16], strides = [1, 1, 1]} : vector<6x8x16xf32> to vector<4x8x16xf32>
      %65 = vector.broadcast %63 : f32 to vector<4x8x16xf32>
      %66 = arith.mulf %65, %64 : vector<4x8x16xf32>
      %67 = arith.addf %61, %66 : vector<4x8x16xf32>
      %c45 = arith.constant 45 : index
      %68 = memref.load %arg4[%c45] : memref<54xf32, #tpu.memory_space<smem>>
      %69 = arith.mulf %68, %37 : f32
      %70 = vector.extract_strided_slice %39 {offsets = [2, 0, 0], sizes = [4, 8, 16], strides = [1, 1, 1]} : vector<6x8x16xf32> to vector<4x8x16xf32>
      %71 = vector.broadcast %69 : f32 to vector<4x8x16xf32>
      %72 = arith.mulf %71, %70 : vector<4x8x16xf32>
      %73 = arith.addf %67, %72 : vector<4x8x16xf32>
      %74 = vector.extract_strided_slice %73 {offsets = [0, 0, 0], sizes = [4, 7, 16], strides = [1, 1, 1]} : vector<4x8x16xf32> to vector<4x7x16xf32>
      %75 = tpu.concatenate %40, %74 in 1 : vector<4x1x16xf32>, vector<4x7x16xf32> -> vector<4x8x16xf32>
      %c3 = arith.constant 3 : index
      %76 = memref.load %arg4[%c3] : memref<54xf32, #tpu.memory_space<smem>>
      %77 = vector.extract_strided_slice %38 {offsets = [0, 0, 0], sizes = [4, 8, 16], strides = [1, 1, 1]} : vector<6x8x16xf32> to vector<4x8x16xf32>
      %78 = vector.broadcast %76 : f32 to vector<4x8x16xf32>
      %79 = arith.mulf %78, %77 : vector<4x8x16xf32>
      %c12 = arith.constant 12 : index
      %80 = memref.load %arg4[%c12] : memref<54xf32, #tpu.memory_space<smem>>
      %81 = vector.extract_strided_slice %38 {offsets = [1, 0, 0], sizes = [4, 8, 16], strides = [1, 1, 1]} : vector<6x8x16xf32> to vector<4x8x16xf32>
      %82 = vector.broadcast %80 : f32 to vector<4x8x16xf32>
      %83 = arith.mulf %82, %81 : vector<4x8x16xf32>
      %84 = arith.addf %79, %83 : vector<4x8x16xf32>
      %c21 = arith.constant 21 : index
      %85 = memref.load %arg4[%c21] : memref<54xf32, #tpu.memory_space<smem>>
      %86 = vector.extract_strided_slice %38 {offsets = [2, 0, 0], sizes = [4, 8, 16], strides = [1, 1, 1]} : vector<6x8x16xf32> to vector<4x8x16xf32>
      %87 = vector.broadcast %85 : f32 to vector<4x8x16xf32>
      %88 = arith.mulf %87, %86 : vector<4x8x16xf32>
      %89 = arith.addf %84, %88 : vector<4x8x16xf32>
      %c30 = arith.constant 30 : index
      %90 = memref.load %arg4[%c30] : memref<54xf32, #tpu.memory_space<smem>>
      %91 = arith.mulf %90, %37 : f32
      %92 = vector.extract_strided_slice %39 {offsets = [0, 0, 0], sizes = [4, 8, 16], strides = [1, 1, 1]} : vector<6x8x16xf32> to vector<4x8x16xf32>
      %93 = vector.broadcast %91 : f32 to vector<4x8x16xf32>
      %94 = arith.mulf %93, %92 : vector<4x8x16xf32>
      %95 = arith.addf %89, %94 : vector<4x8x16xf32>
      %c39 = arith.constant 39 : index
      %96 = memref.load %arg4[%c39] : memref<54xf32, #tpu.memory_space<smem>>
      %97 = arith.mulf %96, %37 : f32
      %98 = vector.extract_strided_slice %39 {offsets = [1, 0, 0], sizes = [4, 8, 16], strides = [1, 1, 1]} : vector<6x8x16xf32> to vector<4x8x16xf32>
      %99 = vector.broadcast %97 : f32 to vector<4x8x16xf32>
      %100 = arith.mulf %99, %98 : vector<4x8x16xf32>
      %101 = arith.addf %95, %100 : vector<4x8x16xf32>
      %c48 = arith.constant 48 : index
      %102 = memref.load %arg4[%c48] : memref<54xf32, #tpu.memory_space<smem>>
      %103 = arith.mulf %102, %37 : f32
      %104 = vector.extract_strided_slice %39 {offsets = [2, 0, 0], sizes = [4, 8, 16], strides = [1, 1, 1]} : vector<6x8x16xf32> to vector<4x8x16xf32>
      %105 = vector.broadcast %103 : f32 to vector<4x8x16xf32>
      %106 = arith.mulf %105, %104 : vector<4x8x16xf32>
      %107 = arith.addf %101, %106 : vector<4x8x16xf32>
      %108 = arith.addf %75, %107 : vector<4x8x16xf32>
      %c6 = arith.constant 6 : index
      %109 = memref.load %arg4[%c6] : memref<54xf32, #tpu.memory_space<smem>>
      %110 = vector.extract_strided_slice %38 {offsets = [0, 0, 0], sizes = [4, 8, 16], strides = [1, 1, 1]} : vector<6x8x16xf32> to vector<4x8x16xf32>
      %111 = vector.broadcast %109 : f32 to vector<4x8x16xf32>
      %112 = arith.mulf %111, %110 : vector<4x8x16xf32>
      %c15 = arith.constant 15 : index
      %113 = memref.load %arg4[%c15] : memref<54xf32, #tpu.memory_space<smem>>
      %114 = vector.extract_strided_slice %38 {offsets = [1, 0, 0], sizes = [4, 8, 16], strides = [1, 1, 1]} : vector<6x8x16xf32> to vector<4x8x16xf32>
      %115 = vector.broadcast %113 : f32 to vector<4x8x16xf32>
      %116 = arith.mulf %115, %114 : vector<4x8x16xf32>
      %117 = arith.addf %112, %116 : vector<4x8x16xf32>
      %c24 = arith.constant 24 : index
      %118 = memref.load %arg4[%c24] : memref<54xf32, #tpu.memory_space<smem>>
      %119 = vector.extract_strided_slice %38 {offsets = [2, 0, 0], sizes = [4, 8, 16], strides = [1, 1, 1]} : vector<6x8x16xf32> to vector<4x8x16xf32>
      %120 = vector.broadcast %118 : f32 to vector<4x8x16xf32>
      %121 = arith.mulf %120, %119 : vector<4x8x16xf32>
      %122 = arith.addf %117, %121 : vector<4x8x16xf32>
      %c33 = arith.constant 33 : index
      %123 = memref.load %arg4[%c33] : memref<54xf32, #tpu.memory_space<smem>>
      %124 = arith.mulf %123, %37 : f32
      %125 = vector.extract_strided_slice %39 {offsets = [0, 0, 0], sizes = [4, 8, 16], strides = [1, 1, 1]} : vector<6x8x16xf32> to vector<4x8x16xf32>
      %126 = vector.broadcast %124 : f32 to vector<4x8x16xf32>
      %127 = arith.mulf %126, %125 : vector<4x8x16xf32>
      %128 = arith.addf %122, %127 : vector<4x8x16xf32>
      %c42 = arith.constant 42 : index
      %129 = memref.load %arg4[%c42] : memref<54xf32, #tpu.memory_space<smem>>
      %130 = arith.mulf %129, %37 : f32
      %131 = vector.extract_strided_slice %39 {offsets = [1, 0, 0], sizes = [4, 8, 16], strides = [1, 1, 1]} : vector<6x8x16xf32> to vector<4x8x16xf32>
      %132 = vector.broadcast %130 : f32 to vector<4x8x16xf32>
      %133 = arith.mulf %132, %131 : vector<4x8x16xf32>
      %134 = arith.addf %128, %133 : vector<4x8x16xf32>
      %c51 = arith.constant 51 : index
      %135 = memref.load %arg4[%c51] : memref<54xf32, #tpu.memory_space<smem>>
      %136 = arith.mulf %135, %37 : f32
      %137 = vector.extract_strided_slice %39 {offsets = [2, 0, 0], sizes = [4, 8, 16], strides = [1, 1, 1]} : vector<6x8x16xf32> to vector<4x8x16xf32>
      %138 = vector.broadcast %136 : f32 to vector<4x8x16xf32>
      %139 = arith.mulf %138, %137 : vector<4x8x16xf32>
      %140 = arith.addf %134, %139 : vector<4x8x16xf32>
      %141 = vector.extract_strided_slice %140 {offsets = [0, 1, 0], sizes = [4, 7, 16], strides = [1, 1, 1]} : vector<4x8x16xf32> to vector<4x7x16xf32>
      %142 = tpu.concatenate %141, %40 in 1 : vector<4x7x16xf32>, vector<4x1x16xf32> -> vector<4x8x16xf32>
      %143 = arith.addf %108, %142 : vector<4x8x16xf32>
      %144 = vector.extract_strided_slice %143 {offsets = [0, 0, 0], sizes = [4, 8, 15], strides = [1, 1, 1]} : vector<4x8x16xf32> to vector<4x8x15xf32>
      %145 = tpu.concatenate %41, %144 in 2 : vector<4x8x1xf32>, vector<4x8x15xf32> -> vector<4x8x16xf32>
      %c1 = arith.constant 1 : index
      %146 = memref.load %arg4[%c1] : memref<54xf32, #tpu.memory_space<smem>>
      %147 = vector.extract_strided_slice %38 {offsets = [0, 0, 0], sizes = [4, 8, 16], strides = [1, 1, 1]} : vector<6x8x16xf32> to vector<4x8x16xf32>
      %148 = vector.broadcast %146 : f32 to vector<4x8x16xf32>
      %149 = arith.mulf %148, %147 : vector<4x8x16xf32>
      %c10 = arith.constant 10 : index
      %150 = memref.load %arg4[%c10] : memref<54xf32, #tpu.memory_space<smem>>
      %151 = vector.extract_strided_slice %38 {offsets = [1, 0, 0], sizes = [4, 8, 16], strides = [1, 1, 1]} : vector<6x8x16xf32> to vector<4x8x16xf32>
      %152 = vector.broadcast %150 : f32 to vector<4x8x16xf32>
      %153 = arith.mulf %152, %151 : vector<4x8x16xf32>
      %154 = arith.addf %149, %153 : vector<4x8x16xf32>
      %c19 = arith.constant 19 : index
      %155 = memref.load %arg4[%c19] : memref<54xf32, #tpu.memory_space<smem>>
      %156 = vector.extract_strided_slice %38 {offsets = [2, 0, 0], sizes = [4, 8, 16], strides = [1, 1, 1]} : vector<6x8x16xf32> to vector<4x8x16xf32>
      %157 = vector.broadcast %155 : f32 to vector<4x8x16xf32>
      %158 = arith.mulf %157, %156 : vector<4x8x16xf32>
      %159 = arith.addf %154, %158 : vector<4x8x16xf32>
      %c28 = arith.constant 28 : index
      %160 = memref.load %arg4[%c28] : memref<54xf32, #tpu.memory_space<smem>>
      %161 = arith.mulf %160, %37 : f32
      %162 = vector.extract_strided_slice %39 {offsets = [0, 0, 0], sizes = [4, 8, 16], strides = [1, 1, 1]} : vector<6x8x16xf32> to vector<4x8x16xf32>
      %163 = vector.broadcast %161 : f32 to vector<4x8x16xf32>
      %164 = arith.mulf %163, %162 : vector<4x8x16xf32>
      %165 = arith.addf %159, %164 : vector<4x8x16xf32>
      %c37 = arith.constant 37 : index
      %166 = memref.load %arg4[%c37] : memref<54xf32, #tpu.memory_space<smem>>
      %167 = arith.mulf %166, %37 : f32
      %168 = vector.extract_strided_slice %39 {offsets = [1, 0, 0], sizes = [4, 8, 16], strides = [1, 1, 1]} : vector<6x8x16xf32> to vector<4x8x16xf32>
      %169 = vector.broadcast %167 : f32 to vector<4x8x16xf32>
      %170 = arith.mulf %169, %168 : vector<4x8x16xf32>
      %171 = arith.addf %165, %170 : vector<4x8x16xf32>
      %c46 = arith.constant 46 : index
      %172 = memref.load %arg4[%c46] : memref<54xf32, #tpu.memory_space<smem>>
      %173 = arith.mulf %172, %37 : f32
      %174 = vector.extract_strided_slice %39 {offsets = [2, 0, 0], sizes = [4, 8, 16], strides = [1, 1, 1]} : vector<6x8x16xf32> to vector<4x8x16xf32>
      %175 = vector.broadcast %173 : f32 to vector<4x8x16xf32>
      %176 = arith.mulf %175, %174 : vector<4x8x16xf32>
      %177 = arith.addf %171, %176 : vector<4x8x16xf32>
      %178 = vector.extract_strided_slice %177 {offsets = [0, 0, 0], sizes = [4, 7, 16], strides = [1, 1, 1]} : vector<4x8x16xf32> to vector<4x7x16xf32>
      %179 = tpu.concatenate %40, %178 in 1 : vector<4x1x16xf32>, vector<4x7x16xf32> -> vector<4x8x16xf32>
      %c4 = arith.constant 4 : index
      %180 = memref.load %arg4[%c4] : memref<54xf32, #tpu.memory_space<smem>>
      %181 = vector.extract_strided_slice %38 {offsets = [0, 0, 0], sizes = [4, 8, 16], strides = [1, 1, 1]} : vector<6x8x16xf32> to vector<4x8x16xf32>
      %182 = vector.broadcast %180 : f32 to vector<4x8x16xf32>
      %183 = arith.mulf %182, %181 : vector<4x8x16xf32>
      %c13 = arith.constant 13 : index
      %184 = memref.load %arg4[%c13] : memref<54xf32, #tpu.memory_space<smem>>
      %185 = vector.extract_strided_slice %38 {offsets = [1, 0, 0], sizes = [4, 8, 16], strides = [1, 1, 1]} : vector<6x8x16xf32> to vector<4x8x16xf32>
      %186 = vector.broadcast %184 : f32 to vector<4x8x16xf32>
      %187 = arith.mulf %186, %185 : vector<4x8x16xf32>
      %188 = arith.addf %183, %187 : vector<4x8x16xf32>
      %c22 = arith.constant 22 : index
      %189 = memref.load %arg4[%c22] : memref<54xf32, #tpu.memory_space<smem>>
      %190 = vector.extract_strided_slice %38 {offsets = [2, 0, 0], sizes = [4, 8, 16], strides = [1, 1, 1]} : vector<6x8x16xf32> to vector<4x8x16xf32>
      %191 = vector.broadcast %189 : f32 to vector<4x8x16xf32>
      %192 = arith.mulf %191, %190 : vector<4x8x16xf32>
      %193 = arith.addf %188, %192 : vector<4x8x16xf32>
      %c31 = arith.constant 31 : index
      %194 = memref.load %arg4[%c31] : memref<54xf32, #tpu.memory_space<smem>>
      %195 = arith.mulf %194, %37 : f32
      %196 = vector.extract_strided_slice %39 {offsets = [0, 0, 0], sizes = [4, 8, 16], strides = [1, 1, 1]} : vector<6x8x16xf32> to vector<4x8x16xf32>
      %197 = vector.broadcast %195 : f32 to vector<4x8x16xf32>
      %198 = arith.mulf %197, %196 : vector<4x8x16xf32>
      %199 = arith.addf %193, %198 : vector<4x8x16xf32>
      %c40 = arith.constant 40 : index
      %200 = memref.load %arg4[%c40] : memref<54xf32, #tpu.memory_space<smem>>
      %201 = arith.mulf %200, %37 : f32
      %202 = vector.extract_strided_slice %39 {offsets = [1, 0, 0], sizes = [4, 8, 16], strides = [1, 1, 1]} : vector<6x8x16xf32> to vector<4x8x16xf32>
      %203 = vector.broadcast %201 : f32 to vector<4x8x16xf32>
      %204 = arith.mulf %203, %202 : vector<4x8x16xf32>
      %205 = arith.addf %199, %204 : vector<4x8x16xf32>
      %c49 = arith.constant 49 : index
      %206 = memref.load %arg4[%c49] : memref<54xf32, #tpu.memory_space<smem>>
      %207 = arith.mulf %206, %37 : f32
      %208 = vector.extract_strided_slice %39 {offsets = [2, 0, 0], sizes = [4, 8, 16], strides = [1, 1, 1]} : vector<6x8x16xf32> to vector<4x8x16xf32>
      %209 = vector.broadcast %207 : f32 to vector<4x8x16xf32>
      %210 = arith.mulf %209, %208 : vector<4x8x16xf32>
      %211 = arith.addf %205, %210 : vector<4x8x16xf32>
      %212 = arith.addf %179, %211 : vector<4x8x16xf32>
      %c7 = arith.constant 7 : index
      %213 = memref.load %arg4[%c7] : memref<54xf32, #tpu.memory_space<smem>>
      %214 = vector.extract_strided_slice %38 {offsets = [0, 0, 0], sizes = [4, 8, 16], strides = [1, 1, 1]} : vector<6x8x16xf32> to vector<4x8x16xf32>
      %215 = vector.broadcast %213 : f32 to vector<4x8x16xf32>
      %216 = arith.mulf %215, %214 : vector<4x8x16xf32>
      %c16 = arith.constant 16 : index
      %217 = memref.load %arg4[%c16] : memref<54xf32, #tpu.memory_space<smem>>
      %218 = vector.extract_strided_slice %38 {offsets = [1, 0, 0], sizes = [4, 8, 16], strides = [1, 1, 1]} : vector<6x8x16xf32> to vector<4x8x16xf32>
      %219 = vector.broadcast %217 : f32 to vector<4x8x16xf32>
      %220 = arith.mulf %219, %218 : vector<4x8x16xf32>
      %221 = arith.addf %216, %220 : vector<4x8x16xf32>
      %c25 = arith.constant 25 : index
      %222 = memref.load %arg4[%c25] : memref<54xf32, #tpu.memory_space<smem>>
      %223 = vector.extract_strided_slice %38 {offsets = [2, 0, 0], sizes = [4, 8, 16], strides = [1, 1, 1]} : vector<6x8x16xf32> to vector<4x8x16xf32>
      %224 = vector.broadcast %222 : f32 to vector<4x8x16xf32>
      %225 = arith.mulf %224, %223 : vector<4x8x16xf32>
      %226 = arith.addf %221, %225 : vector<4x8x16xf32>
      %c34 = arith.constant 34 : index
      %227 = memref.load %arg4[%c34] : memref<54xf32, #tpu.memory_space<smem>>
      %228 = arith.mulf %227, %37 : f32
      %229 = vector.extract_strided_slice %39 {offsets = [0, 0, 0], sizes = [4, 8, 16], strides = [1, 1, 1]} : vector<6x8x16xf32> to vector<4x8x16xf32>
      %230 = vector.broadcast %228 : f32 to vector<4x8x16xf32>
      %231 = arith.mulf %230, %229 : vector<4x8x16xf32>
      %232 = arith.addf %226, %231 : vector<4x8x16xf32>
      %c43 = arith.constant 43 : index
      %233 = memref.load %arg4[%c43] : memref<54xf32, #tpu.memory_space<smem>>
      %234 = arith.mulf %233, %37 : f32
      %235 = vector.extract_strided_slice %39 {offsets = [1, 0, 0], sizes = [4, 8, 16], strides = [1, 1, 1]} : vector<6x8x16xf32> to vector<4x8x16xf32>
      %236 = vector.broadcast %234 : f32 to vector<4x8x16xf32>
      %237 = arith.mulf %236, %235 : vector<4x8x16xf32>
      %238 = arith.addf %232, %237 : vector<4x8x16xf32>
      %c52 = arith.constant 52 : index
      %239 = memref.load %arg4[%c52] : memref<54xf32, #tpu.memory_space<smem>>
      %240 = arith.mulf %239, %37 : f32
      %241 = vector.extract_strided_slice %39 {offsets = [2, 0, 0], sizes = [4, 8, 16], strides = [1, 1, 1]} : vector<6x8x16xf32> to vector<4x8x16xf32>
      %242 = vector.broadcast %240 : f32 to vector<4x8x16xf32>
      %243 = arith.mulf %242, %241 : vector<4x8x16xf32>
      %244 = arith.addf %238, %243 : vector<4x8x16xf32>
      %245 = vector.extract_strided_slice %244 {offsets = [0, 1, 0], sizes = [4, 7, 16], strides = [1, 1, 1]} : vector<4x8x16xf32> to vector<4x7x16xf32>
      %246 = tpu.concatenate %245, %40 in 1 : vector<4x7x16xf32>, vector<4x1x16xf32> -> vector<4x8x16xf32>
      %247 = arith.addf %212, %246 : vector<4x8x16xf32>
      %248 = arith.addf %145, %247 : vector<4x8x16xf32>
      %c2 = arith.constant 2 : index
      %249 = memref.load %arg4[%c2] : memref<54xf32, #tpu.memory_space<smem>>
      %250 = vector.extract_strided_slice %38 {offsets = [0, 0, 0], sizes = [4, 8, 16], strides = [1, 1, 1]} : vector<6x8x16xf32> to vector<4x8x16xf32>
      %251 = vector.broadcast %249 : f32 to vector<4x8x16xf32>
      %252 = arith.mulf %251, %250 : vector<4x8x16xf32>
      %c11 = arith.constant 11 : index
      %253 = memref.load %arg4[%c11] : memref<54xf32, #tpu.memory_space<smem>>
      %254 = vector.extract_strided_slice %38 {offsets = [1, 0, 0], sizes = [4, 8, 16], strides = [1, 1, 1]} : vector<6x8x16xf32> to vector<4x8x16xf32>
      %255 = vector.broadcast %253 : f32 to vector<4x8x16xf32>
      %256 = arith.mulf %255, %254 : vector<4x8x16xf32>
      %257 = arith.addf %252, %256 : vector<4x8x16xf32>
      %c20 = arith.constant 20 : index
      %258 = memref.load %arg4[%c20] : memref<54xf32, #tpu.memory_space<smem>>
      %259 = vector.extract_strided_slice %38 {offsets = [2, 0, 0], sizes = [4, 8, 16], strides = [1, 1, 1]} : vector<6x8x16xf32> to vector<4x8x16xf32>
      %260 = vector.broadcast %258 : f32 to vector<4x8x16xf32>
      %261 = arith.mulf %260, %259 : vector<4x8x16xf32>
      %262 = arith.addf %257, %261 : vector<4x8x16xf32>
      %c29 = arith.constant 29 : index
      %263 = memref.load %arg4[%c29] : memref<54xf32, #tpu.memory_space<smem>>
      %264 = arith.mulf %263, %37 : f32
      %265 = vector.extract_strided_slice %39 {offsets = [0, 0, 0], sizes = [4, 8, 16], strides = [1, 1, 1]} : vector<6x8x16xf32> to vector<4x8x16xf32>
      %266 = vector.broadcast %264 : f32 to vector<4x8x16xf32>
      %267 = arith.mulf %266, %265 : vector<4x8x16xf32>
      %268 = arith.addf %262, %267 : vector<4x8x16xf32>
      %c38 = arith.constant 38 : index
      %269 = memref.load %arg4[%c38] : memref<54xf32, #tpu.memory_space<smem>>
      %270 = arith.mulf %269, %37 : f32
      %271 = vector.extract_strided_slice %39 {offsets = [1, 0, 0], sizes = [4, 8, 16], strides = [1, 1, 1]} : vector<6x8x16xf32> to vector<4x8x16xf32>
      %272 = vector.broadcast %270 : f32 to vector<4x8x16xf32>
      %273 = arith.mulf %272, %271 : vector<4x8x16xf32>
      %274 = arith.addf %268, %273 : vector<4x8x16xf32>
      %c47 = arith.constant 47 : index
      %275 = memref.load %arg4[%c47] : memref<54xf32, #tpu.memory_space<smem>>
      %276 = arith.mulf %275, %37 : f32
      %277 = vector.extract_strided_slice %39 {offsets = [2, 0, 0], sizes = [4, 8, 16], strides = [1, 1, 1]} : vector<6x8x16xf32> to vector<4x8x16xf32>
      %278 = vector.broadcast %276 : f32 to vector<4x8x16xf32>
      %279 = arith.mulf %278, %277 : vector<4x8x16xf32>
      %280 = arith.addf %274, %279 : vector<4x8x16xf32>
      %281 = vector.extract_strided_slice %280 {offsets = [0, 0, 0], sizes = [4, 7, 16], strides = [1, 1, 1]} : vector<4x8x16xf32> to vector<4x7x16xf32>
      %282 = tpu.concatenate %40, %281 in 1 : vector<4x1x16xf32>, vector<4x7x16xf32> -> vector<4x8x16xf32>
      %c5 = arith.constant 5 : index
      %283 = memref.load %arg4[%c5] : memref<54xf32, #tpu.memory_space<smem>>
      %284 = vector.extract_strided_slice %38 {offsets = [0, 0, 0], sizes = [4, 8, 16], strides = [1, 1, 1]} : vector<6x8x16xf32> to vector<4x8x16xf32>
      %285 = vector.broadcast %283 : f32 to vector<4x8x16xf32>
      %286 = arith.mulf %285, %284 : vector<4x8x16xf32>
      %c14 = arith.constant 14 : index
      %287 = memref.load %arg4[%c14] : memref<54xf32, #tpu.memory_space<smem>>
      %288 = vector.extract_strided_slice %38 {offsets = [1, 0, 0], sizes = [4, 8, 16], strides = [1, 1, 1]} : vector<6x8x16xf32> to vector<4x8x16xf32>
      %289 = vector.broadcast %287 : f32 to vector<4x8x16xf32>
      %290 = arith.mulf %289, %288 : vector<4x8x16xf32>
      %291 = arith.addf %286, %290 : vector<4x8x16xf32>
      %c23 = arith.constant 23 : index
      %292 = memref.load %arg4[%c23] : memref<54xf32, #tpu.memory_space<smem>>
      %293 = vector.extract_strided_slice %38 {offsets = [2, 0, 0], sizes = [4, 8, 16], strides = [1, 1, 1]} : vector<6x8x16xf32> to vector<4x8x16xf32>
      %294 = vector.broadcast %292 : f32 to vector<4x8x16xf32>
      %295 = arith.mulf %294, %293 : vector<4x8x16xf32>
      %296 = arith.addf %291, %295 : vector<4x8x16xf32>
      %c32 = arith.constant 32 : index
      %297 = memref.load %arg4[%c32] : memref<54xf32, #tpu.memory_space<smem>>
      %298 = arith.mulf %297, %37 : f32
      %299 = vector.extract_strided_slice %39 {offsets = [0, 0, 0], sizes = [4, 8, 16], strides = [1, 1, 1]} : vector<6x8x16xf32> to vector<4x8x16xf32>
      %300 = vector.broadcast %298 : f32 to vector<4x8x16xf32>
      %301 = arith.mulf %300, %299 : vector<4x8x16xf32>
      %302 = arith.addf %296, %301 : vector<4x8x16xf32>
      %c41 = arith.constant 41 : index
      %303 = memref.load %arg4[%c41] : memref<54xf32, #tpu.memory_space<smem>>
      %304 = arith.mulf %303, %37 : f32
      %305 = vector.extract_strided_slice %39 {offsets = [1, 0, 0], sizes = [4, 8, 16], strides = [1, 1, 1]} : vector<6x8x16xf32> to vector<4x8x16xf32>
      %306 = vector.broadcast %304 : f32 to vector<4x8x16xf32>
      %307 = arith.mulf %306, %305 : vector<4x8x16xf32>
      %308 = arith.addf %302, %307 : vector<4x8x16xf32>
      %c50 = arith.constant 50 : index
      %309 = memref.load %arg4[%c50] : memref<54xf32, #tpu.memory_space<smem>>
      %310 = arith.mulf %309, %37 : f32
      %311 = vector.extract_strided_slice %39 {offsets = [2, 0, 0], sizes = [4, 8, 16], strides = [1, 1, 1]} : vector<6x8x16xf32> to vector<4x8x16xf32>
      %312 = vector.broadcast %310 : f32 to vector<4x8x16xf32>
      %313 = arith.mulf %312, %311 : vector<4x8x16xf32>
      %314 = arith.addf %308, %313 : vector<4x8x16xf32>
      %315 = arith.addf %282, %314 : vector<4x8x16xf32>
      %c8 = arith.constant 8 : index
      %316 = memref.load %arg4[%c8] : memref<54xf32, #tpu.memory_space<smem>>
      %317 = vector.extract_strided_slice %38 {offsets = [0, 0, 0], sizes = [4, 8, 16], strides = [1, 1, 1]} : vector<6x8x16xf32> to vector<4x8x16xf32>
      %318 = vector.broadcast %316 : f32 to vector<4x8x16xf32>
      %319 = arith.mulf %318, %317 : vector<4x8x16xf32>
      %c17 = arith.constant 17 : index
      %320 = memref.load %arg4[%c17] : memref<54xf32, #tpu.memory_space<smem>>
      %321 = vector.extract_strided_slice %38 {offsets = [1, 0, 0], sizes = [4, 8, 16], strides = [1, 1, 1]} : vector<6x8x16xf32> to vector<4x8x16xf32>
      %322 = vector.broadcast %320 : f32 to vector<4x8x16xf32>
      %323 = arith.mulf %322, %321 : vector<4x8x16xf32>
      %324 = arith.addf %319, %323 : vector<4x8x16xf32>
      %c26 = arith.constant 26 : index
      %325 = memref.load %arg4[%c26] : memref<54xf32, #tpu.memory_space<smem>>
      %326 = vector.extract_strided_slice %38 {offsets = [2, 0, 0], sizes = [4, 8, 16], strides = [1, 1, 1]} : vector<6x8x16xf32> to vector<4x8x16xf32>
      %327 = vector.broadcast %325 : f32 to vector<4x8x16xf32>
      %328 = arith.mulf %327, %326 : vector<4x8x16xf32>
      %329 = arith.addf %324, %328 : vector<4x8x16xf32>
      %c35 = arith.constant 35 : index
      %330 = memref.load %arg4[%c35] : memref<54xf32, #tpu.memory_space<smem>>
      %331 = arith.mulf %330, %37 : f32
      %332 = vector.extract_strided_slice %39 {offsets = [0, 0, 0], sizes = [4, 8, 16], strides = [1, 1, 1]} : vector<6x8x16xf32> to vector<4x8x16xf32>
      %333 = vector.broadcast %331 : f32 to vector<4x8x16xf32>
      %334 = arith.mulf %333, %332 : vector<4x8x16xf32>
      %335 = arith.addf %329, %334 : vector<4x8x16xf32>
      %c44 = arith.constant 44 : index
      %336 = memref.load %arg4[%c44] : memref<54xf32, #tpu.memory_space<smem>>
      %337 = arith.mulf %336, %37 : f32
      %338 = vector.extract_strided_slice %39 {offsets = [1, 0, 0], sizes = [4, 8, 16], strides = [1, 1, 1]} : vector<6x8x16xf32> to vector<4x8x16xf32>
      %339 = vector.broadcast %337 : f32 to vector<4x8x16xf32>
      %340 = arith.mulf %339, %338 : vector<4x8x16xf32>
      %341 = arith.addf %335, %340 : vector<4x8x16xf32>
      %c53 = arith.constant 53 : index
      %342 = memref.load %arg4[%c53] : memref<54xf32, #tpu.memory_space<smem>>
      %343 = arith.mulf %342, %37 : f32
      %344 = vector.extract_strided_slice %39 {offsets = [2, 0, 0], sizes = [4, 8, 16], strides = [1, 1, 1]} : vector<6x8x16xf32> to vector<4x8x16xf32>
      %345 = vector.broadcast %343 : f32 to vector<4x8x16xf32>
      %346 = arith.mulf %345, %344 : vector<4x8x16xf32>
      %347 = arith.addf %341, %346 : vector<4x8x16xf32>
      %348 = vector.extract_strided_slice %347 {offsets = [0, 1, 0], sizes = [4, 7, 16], strides = [1, 1, 1]} : vector<4x8x16xf32> to vector<4x7x16xf32>
      %349 = tpu.concatenate %348, %40 in 1 : vector<4x7x16xf32>, vector<4x1x16xf32> -> vector<4x8x16xf32>
      %350 = arith.addf %315, %349 : vector<4x8x16xf32>
      %351 = vector.extract_strided_slice %350 {offsets = [0, 0, 1], sizes = [4, 8, 15], strides = [1, 1, 1]} : vector<4x8x16xf32> to vector<4x8x15xf32>
      %352 = tpu.concatenate %351, %41 in 2 : vector<4x8x15xf32>, vector<4x8x1xf32> -> vector<4x8x16xf32>
      %353 = arith.addf %248, %352 : vector<4x8x16xf32>
      %c0_23 = arith.constant 0 : index
      %354 = memref.load %arg5[%c0_23] : memref<1xf32, #tpu.memory_space<smem>>
      %355 = vector.broadcast %354 : f32 to vector<4x8x16xf32>
      %356 = arith.addf %353, %355 : vector<4x8x16xf32>
      %cst_24 = arith.constant 0.000000e+00 : f32
      %357 = vector.broadcast %cst_24 : f32 to vector<4x8x16xf32>
      %358 = arith.maximumf %356, %357 : vector<4x8x16xf32>
      %c0_25 = arith.constant 0 : index
      %c0_26 = arith.constant 0 : index
      %c0_27 = arith.constant 0 : index
      %c0_28 = arith.constant 0 : index
      %359 = vector.load %arg7[%c0_25, %c0_26, %c0_27, %c0_28] : memref<1x4x8x16xf32, #tpu.memory_space<vmem>>, vector<1x4x8x16xf32>
      %360 = vector.shape_cast %359 : vector<1x4x8x16xf32> to vector<4x8x16xf32>
      %361 = vector.shape_cast %358 : vector<4x8x16xf32> to vector<1x4x8x16xf32>
      tpu.vector_store %arg7[%c0_25, %c0_26, %c0_27, %c0_28], %361 {strides = array<i32>} : memref<1x4x8x16xf32, #tpu.memory_space<vmem>>, vector<1x4x8x16xf32>,
    } else {
    }
    return
  }
  func.func @transform_0(%arg0: i32, %arg1: i32, %arg2: memref<5xi32, #tpu.memory_space<smem>>, %arg3: memref<2xi32, #tpu.memory_space<smem>>) -> i32 {
    %c0_i32 = arith.constant 0 : i32
    %c0_i32_0 = arith.constant 0 : i32
    return %c0_i32 : i32
  }
  func.func @transform_1(%arg0: i32, %arg1: i32, %arg2: memref<5xi32, #tpu.memory_space<smem>>, %arg3: memref<2xi32, #tpu.memory_space<smem>>) -> i32 {
    %c0_i32 = arith.constant 0 : i32
    %c0_i32_0 = arith.constant 0 : i32
    return %c0_i32 : i32
  }
  func.func @transform_2(%arg0: i32, %arg1: i32, %arg2: memref<5xi32, #tpu.memory_space<smem>>, %arg3: memref<2xi32, #tpu.memory_space<smem>>) -> (i32, i32, i32, i32) {
    %c0_i32 = arith.constant 0 : i32
    %c0_i32_0 = arith.constant 0 : i32
    %c0_i32_1 = arith.constant 0 : i32
    return %arg1, %arg0, %c0_i32, %c0_i32_0 : i32, i32, i32, i32
  }
  func.func @transform_3(%arg0: i32, %arg1: i32, %arg2: memref<5xi32, #tpu.memory_space<smem>>, %arg3: memref<2xi32, #tpu.memory_space<smem>>) -> (i32, i32, i32, i32) {
    %0 = arith.index_cast %arg1 : i32 to index
    %1 = memref.load %arg2[%0] : memref<5xi32, #tpu.memory_space<smem>>
    %c0_i32 = arith.constant 0 : i32
    %c0_i32_0 = arith.constant 0 : i32
    %c0_i32_1 = arith.constant 0 : i32
    return %1, %arg0, %c0_i32, %c0_i32_0 : i32, i32, i32, i32
  }
}

</mosaic_0001>

<llo_original>
// kernel: tpu_custom_call.1
$region0: #{tpu_custom_call.1}
  #allocation0 [shape = 'u32[]', space=smem, size = 0x4, offset = 0x4, fixed_abs, tag = 'smem constant byte address 0x4 - core index']
  #allocation1 [shape = 'u32[144,128]{1,0:T(1,128)}', space=vmem, size = 0x12000, scoped, tag = 'internal scratch']
  #allocation2 [shape = 'f32[6,8,16]{2,1,0:T(8,128)}', space=vmem, size = 0x6000, scoped, tag = 'scratch operand']
  #allocation3 [shape = 'f32[6,8,16]{2,1,0:T(8,128)}', space=vmem, size = 0x6000, scoped, tag = 'scratch operand']
  #allocation4 [shape = 's32[1]{0}', space=sflag, size = 0x4, scoped, tag = 'scoped memory for tpu_custom_call.1']
  #allocation5 [shape = 'u8[512]{0}', space=smem, size = 0x200, scoped, tag = 'prefetched SMEM operand 0']
  #allocation6 [shape = 'u8[512]{0}', space=smem, size = 0x200, scoped, tag = 'prefetched SMEM operand 1']
  #allocation7 [shape = 'f32[1]{0:T(128)S(6)}', space=smem, size = 0x200, scoped, tag = 'scoped memory for tpu_custom_call.1']
  %s0 = inlined_call_operand.vmem [shape: s32[5], index: 0, kind: input, shape index: {}]
  %s1 = inlined_call_operand.vmem [shape: s32[2], index: 1, kind: input, shape index: {}]
  %s2 = inlined_call_operand.vmem [shape: f32[54], index: 2, kind: input, shape index: {}]
  %s3 = inlined_call_operand.<no memory space> [shape: f32[1], index: 3, kind: input, shape index: {}]
  %s4 = inlined_call_operand.hbm [shape: f32[5,4,8,16], index: 4, kind: input, shape index: {}]
  %s5 = inlined_call_operand.hbm [shape: f32[2,4,8,16], index: 5, kind: output, shape index: {}]
  %s6 = sld [smem:[#allocation0]]
  $region69: #{tpu_custom_call.1} parent=0
    _
  %s8 = ssub.s32 1, %s6
  %s9 = scalar_select 0, %s8, %s6
  %s10 = sshll.u32 %s0, 4
  %s11 = int_to_ptr.vmem [resolvable:$true] %s10
  %13 = dma.vmem_to_smem %s11, 16, [#allocation5], [#allocation4]
  %s14 = sshll.u32 %s1, 4
  %s15 = int_to_ptr.vmem [resolvable:$true] %s14
  %17 = dma.vmem_to_smem %s15, 16, [#allocation6], [#allocation4]
  %18 = sst [smem:[#allocation7]] %s3
  %19 = dma.done [#allocation4], 32
  %20 = sfence
  $region1: #{tpu_custom_call.1} parent=0
    #allocation8 [shape = 'u8[512]{0}', space=smem, size = 0x200, scoped, tag = 'input window, operand 2, single buffered']
    #allocation9 [shape = 's32[2]{0}', space=sflag, size = 0x8, scoped, tag = 'scoped memory for tpu_custom_call.1']
    #allocation10 [shape = 's32[2]{0}', space=sflag, size = 0x8, scoped, tag = 'scoped memory for tpu_custom_call.1']
    #allocation11 [shape = 's32[2]{0}', space=sflag, size = 0x8, scoped, tag = 'scoped memory for tpu_custom_call.1']
    #allocation12 [shape = 'u8[32768]{0}', space=vmem, size = 0x8000, scoped, tag = 'input window, operand 4']
    #allocation13 [shape = 'u8[32768]{0}', space=vmem, size = 0x8000, scoped, tag = 'output window, operand 0']
    %21 = vsyncpa [#allocation11], 0
    %22 = vsyncpa [#allocation9], 0
    %s23 = scalar_lea.sflag [#allocation9], 1
    %24 = vsyncpa %s23, 0
    %25 = vsyncpa [#allocation10], 0
    %s26 = scalar_lea.sflag [#allocation10], 1
    %27 = vsyncpa %s26, 0
    loop: start=0, step=1, limit=7
    $region2: #{tpu_custom_call.1} parent=1 // loop_pre_header
      _
    $region3: #{tpu_custom_call.1} parent=1 // loop_header
      %s29 = sphi 0, %s33
      %p30 = scmp.ge.s32.totalorder %s29, 7
      %s36 = sphi 0, %s48
      %s37 = sphi 0, %s44
      %s38 = sphi 0, %s36
      %s39 = sphi 0, %s37
      %s40 = sphi 0, %s38
      %s41 = sphi 0, %s39
      %s49 = sphi 0, %s49
      %s51 = sphi 0, %s49
      %s52 = sphi 0, %s51
      %s66 = sphi 0, %s52
      %s70 = sphi 0, %s70
      %s72 = sphi 0, %s70
      %s73 = sphi 0, %s72
      %s87 = sphi 0, %s73
      %s95 = sphi 0, %s97
      %s98 = sphi 0, %s95
      %s99 = sphi 0, %s98
      %s115 = sphi 0, %s99
      %s125 = sphi 0, %s127
      %s128 = sphi 0, %s125
      %s129 = sphi 0, %s128
      %s145 = sphi 0, %s129
    $region4: #{tpu_custom_call.1} parent=1 // loop_header_branch
      %32 = sbr.rel (%p30) target = $region8
    $region5: #{tpu_custom_call.1} parent=1 // loop_body
      %s34 = ssub.s32 %s29, 1
      %s35 = ssub.s32 %s29, 2
      %s42 = sadd.s32 1, %s37
      %p43 = scmp.ge.s32.totalorder %s42, 5
      %s44 = scalar_select %p43, 0, %s42
      %s45 = sadd.s32 1, %s36
      %s46 = scalar_select %p43, %s45, %s36
      %p47 = scmp.ge.s32.totalorder %s46, 1
      %s48 = scalar_select %p47, 0, %s46
      %s50 = sadd.s32 %s49, 1
      %p53 = scmp.eq.s32.totalorder %s29, 4
      %p54 = scmp.ne.s32.totalorder %s49, %s51
      %p55 = scmp.eq.s32.totalorder %s29, 0
      %p56 = por %p54, %p55
      %p57 = scmp.ne.s32.totalorder %s49, %s51
      %p58 = scmp.eq.s32.totalorder %s34, 4
      %p59 = por %p57, %p58
      %p60 = scmp.ne.s32.totalorder %s51, %s52
      %p61 = scmp.eq.s32.totalorder %s34, 0
      %p62 = por %p60, %p61
      %p63 = scmp.ne.s32.totalorder %s51, %s52
      %p64 = scmp.eq.s32.totalorder %s35, 4
      %p65 = por %p63, %p64
      %p67 = scmp.ne.s32.totalorder %s52, %s66
      %p68 = scmp.eq.s32.totalorder %s35, 0
      %p69 = por %p67, %p68
      %s71 = sadd.s32 %s70, 1
      %p74 = scmp.eq.s32.totalorder %s29, 4
      %p75 = scmp.ne.s32.totalorder %s70, %s72
      %p76 = scmp.eq.s32.totalorder %s29, 0
      %p77 = por %p75, %p76
      %p78 = scmp.ne.s32.totalorder %s70, %s72
      %p79 = scmp.eq.s32.totalorder %s34, 4
      %p80 = por %p78, %p79
      %p81 = scmp.ne.s32.totalorder %s72, %s73
      %p82 = scmp.eq.s32.totalorder %s34, 0
      %p83 = por %p81, %p82
      %p84 = scmp.ne.s32.totalorder %s72, %s73
      %p85 = scmp.eq.s32.totalorder %s35, 4
      %p86 = por %p84, %p85
      %p88 = scmp.ne.s32.totalorder %s73, %s87
      %p89 = scmp.eq.s32.totalorder %s35, 0
      %p90 = por %p88, %p89
      %s91 = ssub.s32 %s37, %s44
      %s92 = ssub.s32 %s36, %s48
      %s93 = sor.u32 %s91, %s92
      %p94 = scmp.eq.s32.totalorder %s93, 0
      %s96 = sadd.s32 %s95, 1
      %s97 = scalar_select %p94, %s95, %s96
      %p100 = pneg %p94
      %p101 = scmp.eq.s32.totalorder %s29, 4
      %p102 = por %p100, %p101
      %p103 = scmp.ne.s32.totalorder %s95, %s98
      %p104 = scmp.eq.s32.totalorder %s29, 0
      %p105 = por %p103, %p104
      %p106 = scmp.ne.s32.totalorder %s95, %s98
      %p107 = scmp.eq.s32.totalorder %s34, 4
      %p108 = por %p106, %p107
      %p109 = scmp.ne.s32.totalorder %s98, %s99
      %p110 = scmp.eq.s32.totalorder %s34, 0
      %p111 = por %p109, %p110
      %p112 = scmp.ne.s32.totalorder %s98, %s99
      %p113 = scmp.eq.s32.totalorder %s35, 4
      %p114 = por %p112, %p113
      %p116 = scmp.ne.s32.totalorder %s99, %s115
      %p117 = scmp.eq.s32.totalorder %s35, 0
      %p118 = por %p116, %p117
      %s119 = sld [smem:[#allocation5 + %s37]]
      %s120 = sld [smem:[#allocation5 + %s44]]
      %s121 = ssub.s32 %s119, %s120
      %s122 = ssub.s32 %s36, %s48
      %s123 = sor.u32 %s121, %s122
      %p124 = scmp.eq.s32.totalorder %s123, 0
      %s126 = sadd.s32 %s125, 1
      %s127 = scalar_select %p124, %s125, %s126
      %p130 = pneg %p124
      %p131 = scmp.eq.s32.totalorder %s29, 4
      %p132 = por %p130, %p131
      %p133 = scmp.ne.s32.totalorder %s125, %s128
      %p134 = scmp.eq.s32.totalorder %s29, 0
      %p135 = por %p133, %p134
      %p136 = scmp.ne.s32.totalorder %s125, %s128
      %p137 = scmp.eq.s32.totalorder %s34, 4
      %p138 = por %p136, %p137
      %p139 = scmp.ne.s32.totalorder %s128, %s129
      %p140 = scmp.eq.s32.totalorder %s34, 0
      %p141 = por %p139, %p140
      %p142 = scmp.ne.s32.totalorder %s128, %s129
      %p143 = scmp.eq.s32.totalorder %s35, 4
      %p144 = por %p142, %p143
      %p146 = scmp.ne.s32.totalorder %s129, %s145
      %p147 = scmp.eq.s32.totalorder %s35, 0
      %p148 = por %p146, %p147
      %p149 = scmp.le.s32.totalorder 1, %s29
      %p150 = scmp.lt.s32.totalorder %s29, 6
      %p151 = pnand %p149, %p150
      %p152 = pneg %p151
      // Predicated region
      $region9: #{tpu_custom_call.1} parent=5 // pred_check
        _
      $region10: #{tpu_custom_call.1} parent=5 // pred_check_branch
        %154 = sbr.rel (%p151) target = $region12
      $region11: #{tpu_custom_call.1} parent=5 // pred_region
        %s155 = ssub.s32 %s29, 1
        // Predicated region
        $region13: #{tpu_custom_call.1} parent=11 // pred_check
          %p156 = pneg %p62
        $region14: #{tpu_custom_call.1} parent=11 // pred_check_branch
          %158 = sbr.rel (%p156) target = $region16
        $region15: #{tpu_custom_call.1} parent=11 // pred_region
          %s160 = ssub.s32 16, 16
          %161 = vsyncadd [#allocation11], %s160
          %s163 = sshll.u32 %s2, 4
          %s164 = int_to_ptr.vmem [resolvable:$true] %s163
          %166 = dma.vmem_to_smem %s164, 16, [#allocation8], [#allocation11]
        $region16: #{tpu_custom_call.1} parent=11 // pred_fallthru
          _
        // Predicated region
        $region17: #{tpu_custom_call.1} parent=11 // pred_check
          %p167 = pneg %p83
        $region18: #{tpu_custom_call.1} parent=11 // pred_check_branch
          %169 = sbr.rel (%p167) target = $region20
        $region19: #{tpu_custom_call.1} parent=11 // pred_region
          _
        $region20: #{tpu_custom_call.1} parent=11 // pred_fallthru
          _
      $region12: #{tpu_custom_call.1} parent=5 // pred_fallthru
        _
      %p170 = scmp.lt.s32.totalorder %s29, 5
      // Predicated region
      $region21: #{tpu_custom_call.1} parent=5 // pred_check
        %p171 = pneg %p170
      $region22: #{tpu_custom_call.1} parent=5 // pred_check_branch
        %173 = sbr.rel (%p171) target = $region24
      $region23: #{tpu_custom_call.1} parent=5 // pred_region
        // Predicated region
        $region25: #{tpu_custom_call.1} parent=23 // pred_check
          %p174 = pneg %p105
        $region26: #{tpu_custom_call.1} parent=23 // pred_check_branch
          %176 = sbr.rel (%p174) target = $region28
        $region27: #{tpu_custom_call.1} parent=23 // pred_region
          %s177 = sand.u32 %s95, 1
          %s178 = scalar_lea.sflag [#allocation9], %s177
          %s179 = sand.u32 %s95, 1
          %s180 = smul.addr %s179, 32
          %s181 = scalar_lea.vmem [#allocation12], %s180
          %s182 = smul.u32 4, %s36
          %s184 = ssub.s32 512, 512
          %185 = vsyncadd %s178, %s184
          %s186 = smul.addr %s37, 4
          %s187 = sadd.s32 %s182, %s186
          %s188 = smul.addr %s187, 128
          %s189 = scalar_lea.hbm %s4, %s188
          %s190 = sshll.u32 %s181, 4
          %s191 = int_to_ptr.vmem [resolvable:$true] %s190
          %196 = dma.hbm_to_vmem [thread:$0]  %s189, 512, %s191, %s178, 128, 128, 8
        $region28: #{tpu_custom_call.1} parent=23 // pred_fallthru
          _
      $region24: #{tpu_custom_call.1} parent=5 // pred_fallthru
        _
      %p197 = scmp.le.s32.totalorder 1, %s29
      %p198 = scmp.lt.s32.totalorder %s29, 6
      %p199 = pnand %p197, %p198
      %p200 = pneg %p199
      // Predicated region
      $region29: #{tpu_custom_call.1} parent=5 // pred_check
        _
      $region30: #{tpu_custom_call.1} parent=5 // pred_check_branch
        %202 = sbr.rel (%p199) target = $region32
      $region31: #{tpu_custom_call.1} parent=5 // pred_region
        %s203 = ssub.s32 %s29, 1
        // Predicated region
        $region33: #{tpu_custom_call.1} parent=31 // pred_check
          %p204 = pneg %p62
        $region34: #{tpu_custom_call.1} parent=31 // pred_check_branch
          %206 = sbr.rel (%p204) target = $region36
        $region35: #{tpu_custom_call.1} parent=31 // pred_region
          %207 = dma.done [#allocation11], 16
        $region36: #{tpu_custom_call.1} parent=31 // pred_fallthru
          _
        %s208 = sand.u32 %s98, 1
        %s209 = scalar_lea.sflag [#allocation9], %s208
        %s210 = sand.u32 %s98, 1
        %s211 = smul.addr %s210, 32
        %s212 = scalar_lea.vmem [#allocation12], %s211
        // Predicated region
        $region37: #{tpu_custom_call.1} parent=31 // pred_check
          %p213 = pneg %p111
        $region38: #{tpu_custom_call.1} parent=31 // pred_check_branch
          %215 = sbr.rel (%p213) target = $region40
        $region39: #{tpu_custom_call.1} parent=31 // pred_region
          %216 = dma.done %s209, 512
        $region40: #{tpu_custom_call.1} parent=31 // pred_fallthru
          _
        %217 = sfence
        %p218 = pneg %p62
        %p219 = pneg %p59
        %p220 = pneg %p83
        %p221 = pneg %p80
        %s222 = sand.u32 %s98, 1
        %s223 = scalar_lea.sflag [#allocation9], %s222
        %s224 = sand.u32 %s98, 1
        %s225 = smul.addr %s224, 32
        %s226 = scalar_lea.vmem [#allocation12], %s225
        %p227 = pneg %p111
        %p228 = pneg %p108
        %p229 = pneg %p141
        %p230 = pneg %p138
        %s231 = sand.u32 %s128, 1
        %s232 = scalar_lea.sflag [#allocation10], %s231
        %s233 = sand.u32 %s128, 1
        %s234 = smul.addr %s233, 32
        %s235 = scalar_lea.vmem [#allocation13], %s234
        %s236 = smul.u32 4, %s38
        %s237 = sld [smem:[#allocation5 + %s39]]
        %s238 = smul.u32 4, %s38
        %s239 = sld [smem:[#allocation5 + %s39]]
        %p240 = scmp.eq.s32.totalorder %s39, 0
        %s241 = ssub.s32 %s39, 1
        %p242 = scmp.gt.s32.totalorder %s241, 0
        %s243 = scalar_select %p242, %s241, 0
        %s244 = sld [smem:[#allocation5 + %s243]]
        %p245 = scmp.ne.s32.totalorder %s244, %s239
        %p246 = por %p240, %p245
        %p247 = scmp.eq.s32.totalorder %s39, 4
        %s248 = sadd.s32 %s39, 1
        %p249 = scmp.lt.s32.totalorder %s248, 4
        %s250 = scalar_select %p249, %s248, 4
        %s251 = sld [smem:[#allocation5 + %s250]]
        %p252 = scmp.ne.s32.totalorder %s251, %s239
        %p253 = por %p247, %p252
        %v254 = vld [vmem:[%s212] sm:$0xff]
        %v255 = vld [vmem:[%s212 + $0x8] sm:$0xff]
        %v256 = vld [vmem:[%s212 + $0x10] sm:$0xff]
        %v257 = vld [vmem:[%s212 + $0x18] sm:$0xff]
        // Predicated region
        $region41: #{tpu_custom_call.1} parent=31 // pred_check
          %p258 = pneg %p246
        $region42: #{tpu_custom_call.1} parent=31 // pred_check_branch
          %260 = sbr.rel (%p258) target = $region44
        $region43: #{tpu_custom_call.1} parent=31 // pred_region
          %s261 = scalar_lea.vmem [#allocation2], 8
          %vm262 = vcmask 130048
          %263 = vst.msk [vmem:[%s261] sm:$0xff] %vm262, %v254
          %264 = vst.msk [vmem:[%s261 + $0x8] sm:$0xff] %vm262, %v255
          %265 = vst.msk [vmem:[%s261 + $0x10] sm:$0xff] %vm262, %v256
          %266 = vst.msk [vmem:[%s261 + $0x18] sm:$0xff] %vm262, %v257
          %s267 = scalar_lea.vmem [#allocation3], 8
          %268 = vst.msk [vmem:[%s267] sm:$0xff] %vm262, %v254
          %269 = vst.msk [vmem:[%s267 + $0x8] sm:$0xff] %vm262, %v255
          %270 = vst.msk [vmem:[%s267 + $0x10] sm:$0xff] %vm262, %v256
          %271 = vst.msk [vmem:[%s267 + $0x18] sm:$0xff] %vm262, %v257
        $region44: #{tpu_custom_call.1} parent=31 // pred_fallthru
          _
        %p272 = pneg %p246
        // Predicated region
        $region45: #{tpu_custom_call.1} parent=31 // pred_check
          _
        $region46: #{tpu_custom_call.1} parent=31 // pred_check_branch
          %274 = sbr.rel (%p246) target = $region48
        $region47: #{tpu_custom_call.1} parent=31 // pred_region
          %s275 = scalar_lea.vmem [#allocation2], 8
          %v276 = vld [vmem:[%s275] sm:$0xff]
          %v277 = vld [vmem:[%s275 + $0x8] sm:$0xff]
          %v278 = vld [vmem:[%s275 + $0x10] sm:$0xff]
          %v279 = vld [vmem:[%s275 + $0x18] sm:$0xff]
          %v280 = vmax.f32 %v276, %v254
          %v281 = vmax.f32 %v277, %v255
          %v282 = vmax.f32 %v278, %v256
          %v283 = vmax.f32 %v279, %v257
          %vm284 = vcmask 130048
          %285 = vst.msk [vmem:[%s275] sm:$0xff] %vm284, %v280
          %286 = vst.msk [vmem:[%s275 + $0x8] sm:$0xff] %vm284, %v281
          %287 = vst.msk [vmem:[%s275 + $0x10] sm:$0xff] %vm284, %v282
          %288 = vst.msk [vmem:[%s275 + $0x18] sm:$0xff] %vm284, %v283
          %s289 = scalar_lea.vmem [#allocation3], 8
          %v290 = vld [vmem:[%s289] sm:$0xff]
          %v291 = vld [vmem:[%s289 + $0x8] sm:$0xff]
          %v292 = vld [vmem:[%s289 + $0x10] sm:$0xff]
          %v293 = vld [vmem:[%s289 + $0x18] sm:$0xff]
          %v294 = vadd.f32 %v290, %v254
          %v295 = vadd.f32 %v291, %v255
          %v296 = vadd.f32 %v292, %v256
          %v297 = vadd.f32 %v293, %v257
          %298 = vst.msk [vmem:[%s289] sm:$0xff] %vm284, %v294
          %299 = vst.msk [vmem:[%s289 + $0x8] sm:$0xff] %vm284, %v295
          %300 = vst.msk [vmem:[%s289 + $0x10] sm:$0xff] %vm284, %v296
          %301 = vst.msk [vmem:[%s289 + $0x18] sm:$0xff] %vm284, %v297
        $region48: #{tpu_custom_call.1} parent=31 // pred_fallthru
          _
        %p302 = scmp.eq.s32.totalorder %s38, 0
        %p303 = pnand %p253, %p302
        %p304 = pneg %p303
        // Predicated region
        $region49: #{tpu_custom_call.1} parent=31 // pred_check
          _
        $region50: #{tpu_custom_call.1} parent=31 // pred_check_branch
          %306 = sbr.rel (%p303) target = $region52
        $region51: #{tpu_custom_call.1} parent=31 // pred_region
          %vm307 = vcmask 130048
          %308 = vst.msk [vmem:[#allocation2] sm:$0xff] %vm307, 0.0
          %309 = vst.msk [vmem:[#allocation3] sm:$0xff] %vm307, 0.0
          %s310 = scalar_lea.vmem [#allocation2], 40
          %311 = vst.msk [vmem:[%s310] sm:$0xff] %vm307, 0.0
          %s312 = scalar_lea.vmem [#allocation3], 40
          %313 = vst.msk [vmem:[%s312] sm:$0xff] %vm307, 0.0
        $region52: #{tpu_custom_call.1} parent=31 // pred_fallthru
          _
        // Predicated region
        $region53: #{tpu_custom_call.1} parent=31 // pred_check
          %p314 = pneg %p253
        $region54: #{tpu_custom_call.1} parent=31 // pred_check_branch
          %316 = sbr.rel (%p314) target = $region56
        $region55: #{tpu_custom_call.1} parent=31 // pred_region
          %s317 = sld [smem:[#allocation6 + %s239]]
          %s318 = scvt.s32.f32 %s317
          %v319 = vstv %s318
          %v320 = vrcp.pop %v319
          %s321 = vtos %v320
          %v322 = vld [vmem:[#allocation2] sm:$0xff]
          %v323 = vld [vmem:[#allocation2 + $0x8] sm:$0xff]
          %v324 = vld [vmem:[#allocation2 + $0x10] sm:$0xff]
          %v325 = vld [vmem:[#allocation2 + $0x18] sm:$0xff]
          %v326 = vld [vmem:[#allocation2 + $0x20] sm:$0xff]
          %v327 = vld [vmem:[#allocation2 + $0x28] sm:$0xff]
          %v328 = vld [vmem:[#allocation3] sm:$0xff]
          %v329 = vld [vmem:[#allocation3 + $0x8] sm:$0xff]
          %v330 = vld [vmem:[#allocation3 + $0x10] sm:$0xff]
          %v331 = vld [vmem:[#allocation3 + $0x18] sm:$0xff]
          %v332 = vld [vmem:[#allocation3 + $0x20] sm:$0xff]
          %v333 = vld [vmem:[#allocation3 + $0x28] sm:$0xff]
          %s334 = sld [smem:[#allocation8]]
          %v335 = vstv %s334
          %v336 = vmul.f32 %v335, %v322
          %v337 = vmul.f32 %v335, %v323
          %v338 = vmul.f32 %v335, %v324
          %v339 = vmul.f32 %v335, %v325
          %s340 = sld [smem:[#allocation8 + $0x9]]
          %v341 = vstv %s340
          %v342 = vmul.f32 %v341, %v323
          %v343 = vmul.f32 %v341, %v324
          %v344 = vmul.f32 %v341, %v325
          %v345 = vmul.f32 %v341, %v326
          %v346 = vadd.f32 %v336, %v342
          %v347 = vadd.f32 %v337, %v343
          %v348 = vadd.f32 %v338, %v344
          %v349 = vadd.f32 %v339, %v345
          %s350 = sld [smem:[#allocation8 + $0x12]]
          %v351 = vstv %s350
          %v352 = vmul.f32 %v351, %v324
          %v353 = vmul.f32 %v351, %v325
          %v354 = vmul.f32 %v351, %v326
          %v355 = vmul.f32 %v351, %v327
          %v356 = vadd.f32 %v346, %v352
          %v357 = vadd.f32 %v347, %v353
          %v358 = vadd.f32 %v348, %v354
          %v359 = vadd.f32 %v349, %v355
          %s360 = sld [smem:[#allocation8 + $0x1b]]
          %s361 = smul.f32 %s360, %s321
          %v362 = vstv %s361
          %v363 = vmul.f32 %v362, %v328
          %v364 = vmul.f32 %v362, %v329
          %v365 = vmul.f32 %v362, %v330
          %v366 = vmul.f32 %v362, %v331
          %v367 = vadd.f32 %v356, %v363
          %v368 = vadd.f32 %v357, %v364
          %v369 = vadd.f32 %v358, %v365
          %v370 = vadd.f32 %v359, %v366
          %s371 = sld [smem:[#allocation8 + $0x24]]
          %s372 = smul.f32 %s371, %s321
          %v373 = vstv %s372
          %v374 = vmul.f32 %v373, %v329
          %v375 = vmul.f32 %v373, %v330
          %v376 = vmul.f32 %v373, %v331
          %v377 = vmul.f32 %v373, %v332
          %v378 = vadd.f32 %v367, %v374
          %v379 = vadd.f32 %v368, %v375
          %v380 = vadd.f32 %v369, %v376
          %v381 = vadd.f32 %v370, %v377
          %s382 = sld [smem:[#allocation8 + $0x2d]]
          %s383 = smul.f32 %s382, %s321
          %v384 = vstv %s383
          %v385 = vmul.f32 %v384, %v330
          %v386 = vmul.f32 %v384, %v331
          %v387 = vmul.f32 %v384, %v332
          %v388 = vmul.f32 %v384, %v333
          %v389 = vadd.f32 %v378, %v385
          %v390 = vadd.f32 %v379, %v386
          %v391 = vadd.f32 %v380, %v387
          %v392 = vadd.f32 %v381, %v388
          %v397 = vrot.slane %v389, 7
          %v398 = vrot.slane %v390, 7
          %v399 = vrot.slane %v391, 7
          %v400 = vrot.slane %v392, 7
          %vm405 = vcmask 1040384
          %v406 = vsel %vm405, 0.0, %v397
          %v407 = vsel %vm405, 0.0, %v398
          %v408 = vsel %vm405, 0.0, %v399
          %v409 = vsel %vm405, 0.0, %v400
          %s410 = sld [smem:[#allocation8 + $0x3]]
          %v411 = vstv %s410
          %v412 = vmul.f32 %v411, %v322
          %v413 = vmul.f32 %v411, %v323
          %v414 = vmul.f32 %v411, %v324
          %v415 = vmul.f32 %v411, %v325
          %s416 = sld [smem:[#allocation8 + $0xc]]
          %v417 = vstv %s416
          %v418 = vmul.f32 %v417, %v323
          %v419 = vmul.f32 %v417, %v324
          %v420 = vmul.f32 %v417, %v325
          %v421 = vmul.f32 %v417, %v326
          %v422 = vadd.f32 %v412, %v418
          %v423 = vadd.f32 %v413, %v419
          %v424 = vadd.f32 %v414, %v420
          %v425 = vadd.f32 %v415, %v421
          %s426 = sld [smem:[#allocation8 + $0x15]]
          %v427 = vstv %s426
          %v428 = vmul.f32 %v427, %v324
          %v429 = vmul.f32 %v427, %v325
          %v430 = vmul.f32 %v427, %v326
          %v431 = vmul.f32 %v427, %v327
          %v432 = vadd.f32 %v422, %v428
          %v433 = vadd.f32 %v423, %v429
          %v434 = vadd.f32 %v424, %v430
          %v435 = vadd.f32 %v425, %v431
          %s436 = sld [smem:[#allocation8 + $0x1e]]
          %s437 = smul.f32 %s436, %s321
          %v438 = vstv %s437
          %v439 = vmul.f32 %v438, %v328
          %v440 = vmul.f32 %v438, %v329
          %v441 = vmul.f32 %v438, %v330
          %v442 = vmul.f32 %v438, %v331
          %v443 = vadd.f32 %v432, %v439
          %v444 = vadd.f32 %v433, %v440
          %v445 = vadd.f32 %v434, %v441
          %v446 = vadd.f32 %v435, %v442
          %s447 = sld [smem:[#allocation8 + $0x27]]
          %s448 = smul.f32 %s447, %s321
          %v449 = vstv %s448
          %v450 = vmul.f32 %v449, %v329
          %v451 = vmul.f32 %v449, %v330
          %v452 = vmul.f32 %v449, %v331
          %v453 = vmul.f32 %v449, %v332
          %v454 = vadd.f32 %v443, %v450
          %v455 = vadd.f32 %v444, %v451
          %v456 = vadd.f32 %v445, %v452
          %v457 = vadd.f32 %v446, %v453
          %s458 = sld [smem:[#allocation8 + $0x30]]
          %s459 = smul.f32 %s458, %s321
          %v460 = vstv %s459
          %v461 = vmul.f32 %v460, %v330
          %v462 = vmul.f32 %v460, %v331
          %v463 = vmul.f32 %v460, %v332
          %v464 = vmul.f32 %v460, %v333
          %v465 = vadd.f32 %v454, %v461
          %v466 = vadd.f32 %v455, %v462
          %v467 = vadd.f32 %v456, %v463
          %v468 = vadd.f32 %v457, %v464
          %v469 = vadd.f32 %v406, %v465
          %v470 = vadd.f32 %v407, %v466
          %v471 = vadd.f32 %v408, %v467
          %v472 = vadd.f32 %v409, %v468
          %s473 = sld [smem:[#allocation8 + $0x6]]
          %v474 = vstv %s473
          %v475 = vmul.f32 %v474, %v322
          %v476 = vmul.f32 %v474, %v323
          %v477 = vmul.f32 %v474, %v324
          %v478 = vmul.f32 %v474, %v325
          %s479 = sld [smem:[#allocation8 + $0xf]]
          %v480 = vstv %s479
          %v481 = vmul.f32 %v480, %v323
          %v482 = vmul.f32 %v480, %v324
          %v483 = vmul.f32 %v480, %v325
          %v484 = vmul.f32 %v480, %v326
          %v485 = vadd.f32 %v475, %v481
          %v486 = vadd.f32 %v476, %v482
          %v487 = vadd.f32 %v477, %v483
          %v488 = vadd.f32 %v478, %v484
          %s489 = sld [smem:[#allocation8 + $0x18]]
          %v490 = vstv %s489
          %v491 = vmul.f32 %v490, %v324
          %v492 = vmul.f32 %v490, %v325
          %v493 = vmul.f32 %v490, %v326
          %v494 = vmul.f32 %v490, %v327
          %v495 = vadd.f32 %v485, %v491
          %v496 = vadd.f32 %v486, %v492
          %v497 = vadd.f32 %v487, %v493
          %v498 = vadd.f32 %v488, %v494
          %s499 = sld [smem:[#allocation8 + $0x21]]
          %s500 = smul.f32 %s499, %s321
          %v501 = vstv %s500
          %v502 = vmul.f32 %v501, %v328
          %v503 = vmul.f32 %v501, %v329
          %v504 = vmul.f32 %v501, %v330
          %v505 = vmul.f32 %v501, %v331
          %v506 = vadd.f32 %v495, %v502
          %v507 = vadd.f32 %v496, %v503
          %v508 = vadd.f32 %v497, %v504
          %v509 = vadd.f32 %v498, %v505
          %s510 = sld [smem:[#allocation8 + $0x2a]]
          %s511 = smul.f32 %s510, %s321
          %v512 = vstv %s511
          %v513 = vmul.f32 %v512, %v329
          %v514 = vmul.f32 %v512, %v330
          %v515 = vmul.f32 %v512, %v331
          %v516 = vmul.f32 %v512, %v332
          %v517 = vadd.f32 %v506, %v513
          %v518 = vadd.f32 %v507, %v514
          %v519 = vadd.f32 %v508, %v515
          %v520 = vadd.f32 %v509, %v516
          %s521 = sld [smem:[#allocation8 + $0x33]]
          %s522 = smul.f32 %s521, %s321
          %v523 = vstv %s522
          %v524 = vmul.f32 %v523, %v330
          %v525 = vmul.f32 %v523, %v331
          %v526 = vmul.f32 %v523, %v332
          %v527 = vmul.f32 %v523, %v333
          %v528 = vadd.f32 %v517, %v524
          %v529 = vadd.f32 %v518, %v525
          %v530 = vadd.f32 %v519, %v526
          %v531 = vadd.f32 %v520, %v527
          %v536 = vrot.slane %v528, 1
          %v537 = vrot.slane %v529, 1
          %v538 = vrot.slane %v530, 1
          %v539 = vrot.slane %v531, 1
          %vm544 = vcmask 1046528
          %v545 = vsel %vm544, %v536, 0.0
          %v546 = vsel %vm544, %v537, 0.0
          %v547 = vsel %vm544, %v538, 0.0
          %v548 = vsel %vm544, %v539, 0.0
          %v549 = vadd.f32 %v469, %v545
          %v550 = vadd.f32 %v470, %v546
          %v551 = vadd.f32 %v471, %v547
          %v552 = vadd.f32 %v472, %v548
          %557 = vrot.lane.b32.xlu0 %v549, 1
          %v558 = vpop.permute.xlu0 %557
          %559 = vrot.lane.b32.xlu0 %v550, 1
          %v560 = vpop.permute.xlu0 %559
          %561 = vrot.lane.b32.xlu0 %v551, 1
          %v562 = vpop.permute.xlu0 %561
          %563 = vrot.lane.b32.xlu0 %v552, 1
          %v564 = vpop.permute.xlu0 %563
          %vm569 = vcmask 7168
          %v570 = vsel %vm569, 0.0, %v558
          %v571 = vsel %vm569, 0.0, %v560
          %v572 = vsel %vm569, 0.0, %v562
          %v573 = vsel %vm569, 0.0, %v564
          %s574 = sld [smem:[#allocation8 + $0x1]]
          %v575 = vstv %s574
          %v576 = vmul.f32 %v575, %v322
          %v577 = vmul.f32 %v575, %v323
          %v578 = vmul.f32 %v575, %v324
          %v579 = vmul.f32 %v575, %v325
          %s580 = sld [smem:[#allocation8 + $0xa]]
          %v581 = vstv %s580
          %v582 = vmul.f32 %v581, %v323
          %v583 = vmul.f32 %v581, %v324
          %v584 = vmul.f32 %v581, %v325
          %v585 = vmul.f32 %v581, %v326
          %v586 = vadd.f32 %v576, %v582
          %v587 = vadd.f32 %v577, %v583
          %v588 = vadd.f32 %v578, %v584
          %v589 = vadd.f32 %v579, %v585
          %s590 = sld [smem:[#allocation8 + $0x13]]
          %v591 = vstv %s590
          %v592 = vmul.f32 %v591, %v324
          %v593 = vmul.f32 %v591, %v325
          %v594 = vmul.f32 %v591, %v326
          %v595 = vmul.f32 %v591, %v327
          %v596 = vadd.f32 %v586, %v592
          %v597 = vadd.f32 %v587, %v593
          %v598 = vadd.f32 %v588, %v594
          %v599 = vadd.f32 %v589, %v595
          %s600 = sld [smem:[#allocation8 + $0x1c]]
          %s601 = smul.f32 %s600, %s321
          %v602 = vstv %s601
          %v603 = vmul.f32 %v602, %v328
          %v604 = vmul.f32 %v602, %v329
          %v605 = vmul.f32 %v602, %v330
          %v606 = vmul.f32 %v602, %v331
          %v607 = vadd.f32 %v596, %v603
          %v608 = vadd.f32 %v597, %v604
          %v609 = vadd.f32 %v598, %v605
          %v610 = vadd.f32 %v599, %v606
          %s611 = sld [smem:[#allocation8 + $0x25]]
          %s612 = smul.f32 %s611, %s321
          %v613 = vstv %s612
          %v614 = vmul.f32 %v613, %v329
          %v615 = vmul.f32 %v613, %v330
          %v616 = vmul.f32 %v613, %v331
          %v617 = vmul.f32 %v613, %v332
          %v618 = vadd.f32 %v607, %v614
          %v619 = vadd.f32 %v608, %v615
          %v620 = vadd.f32 %v609, %v616
          %v621 = vadd.f32 %v610, %v617
          %s622 = sld [smem:[#allocation8 + $0x2e]]
          %s623 = smul.f32 %s622, %s321
          %v624 = vstv %s623
          %v625 = vmul.f32 %v624, %v330
          %v626 = vmul.f32 %v624, %v331
          %v627 = vmul.f32 %v624, %v332
          %v628 = vmul.f32 %v624, %v333
          %v629 = vadd.f32 %v618, %v625
          %v630 = vadd.f32 %v619, %v626
          %v631 = vadd.f32 %v620, %v627
          %v632 = vadd.f32 %v621, %v628
          %v637 = vrot.slane %v629, 7
          %v638 = vrot.slane %v630, 7
          %v639 = vrot.slane %v631, 7
          %v640 = vrot.slane %v632, 7
          %v645 = vsel %vm405, 0.0, %v637
          %v646 = vsel %vm405, 0.0, %v638
          %v647 = vsel %vm405, 0.0, %v639
          %v648 = vsel %vm405, 0.0, %v640
          %s649 = sld [smem:[#allocation8 + $0x4]]
          %v650 = vstv %s649
          %v651 = vmul.f32 %v650, %v322
          %v652 = vmul.f32 %v650, %v323
          %v653 = vmul.f32 %v650, %v324
          %v654 = vmul.f32 %v650, %v325
          %s655 = sld [smem:[#allocation8 + $0xd]]
          %v656 = vstv %s655
          %v657 = vmul.f32 %v656, %v323
          %v658 = vmul.f32 %v656, %v324
          %v659 = vmul.f32 %v656, %v325
          %v660 = vmul.f32 %v656, %v326
          %v661 = vadd.f32 %v651, %v657
          %v662 = vadd.f32 %v652, %v658
          %v663 = vadd.f32 %v653, %v659
          %v664 = vadd.f32 %v654, %v660
          %s665 = sld [smem:[#allocation8 + $0x16]]
          %v666 = vstv %s665
          %v667 = vmul.f32 %v666, %v324
          %v668 = vmul.f32 %v666, %v325
          %v669 = vmul.f32 %v666, %v326
          %v670 = vmul.f32 %v666, %v327
          %v671 = vadd.f32 %v661, %v667
          %v672 = vadd.f32 %v662, %v668
          %v673 = vadd.f32 %v663, %v669
          %v674 = vadd.f32 %v664, %v670
          %s675 = sld [smem:[#allocation8 + $0x1f]]
          %s676 = smul.f32 %s675, %s321
          %v677 = vstv %s676
          %v678 = vmul.f32 %v677, %v328
          %v679 = vmul.f32 %v677, %v329
          %v680 = vmul.f32 %v677, %v330
          %v681 = vmul.f32 %v677, %v331
          %v682 = vadd.f32 %v671, %v678
          %v683 = vadd.f32 %v672, %v679
          %v684 = vadd.f32 %v673, %v680
          %v685 = vadd.f32 %v674, %v681
          %s686 = sld [smem:[#allocation8 + $0x28]]
          %s687 = smul.f32 %s686, %s321
          %v688 = vstv %s687
          %v689 = vmul.f32 %v688, %v329
          %v690 = vmul.f32 %v688, %v330
          %v691 = vmul.f32 %v688, %v331
          %v692 = vmul.f32 %v688, %v332
          %v693 = vadd.f32 %v682, %v689
          %v694 = vadd.f32 %v683, %v690
          %v695 = vadd.f32 %v684, %v691
          %v696 = vadd.f32 %v685, %v692
          %s697 = sld [smem:[#allocation8 + $0x31]]
          %s698 = smul.f32 %s697, %s321
          %v699 = vstv %s698
          %v700 = vmul.f32 %v699, %v330
          %v701 = vmul.f32 %v699, %v331
          %v702 = vmul.f32 %v699, %v332
          %v703 = vmul.f32 %v699, %v333
          %v704 = vadd.f32 %v693, %v700
          %v705 = vadd.f32 %v694, %v701
          %v706 = vadd.f32 %v695, %v702
          %v707 = vadd.f32 %v696, %v703
          %v708 = vadd.f32 %v645, %v704
          %v709 = vadd.f32 %v646, %v705
          %v710 = vadd.f32 %v647, %v706
          %v711 = vadd.f32 %v648, %v707
          %s712 = sld [smem:[#allocation8 + $0x7]]
          %v713 = vstv %s712
          %v714 = vmul.f32 %v713, %v322
          %v715 = vmul.f32 %v713, %v323
          %v716 = vmul.f32 %v713, %v324
          %v717 = vmul.f32 %v713, %v325
          %s718 = sld [smem:[#allocation8 + $0x10]]
          %v719 = vstv %s718
          %v720 = vmul.f32 %v719, %v323
          %v721 = vmul.f32 %v719, %v324
          %v722 = vmul.f32 %v719, %v325
          %v723 = vmul.f32 %v719, %v326
          %v724 = vadd.f32 %v714, %v720
          %v725 = vadd.f32 %v715, %v721
          %v726 = vadd.f32 %v716, %v722
          %v727 = vadd.f32 %v717, %v723
          %s728 = sld [smem:[#allocation8 + $0x19]]
          %v729 = vstv %s728
          %v730 = vmul.f32 %v729, %v324
          %v731 = vmul.f32 %v729, %v325
          %v732 = vmul.f32 %v729, %v326
          %v733 = vmul.f32 %v729, %v327
          %v734 = vadd.f32 %v724, %v730
          %v735 = vadd.f32 %v725, %v731
          %v736 = vadd.f32 %v726, %v732
          %v737 = vadd.f32 %v727, %v733
          %s738 = sld [smem:[#allocation8 + $0x22]]
          %s739 = smul.f32 %s738, %s321
          %v740 = vstv %s739
          %v741 = vmul.f32 %v740, %v328
          %v742 = vmul.f32 %v740, %v329
          %v743 = vmul.f32 %v740, %v330
          %v744 = vmul.f32 %v740, %v331
          %v745 = vadd.f32 %v734, %v741
          %v746 = vadd.f32 %v735, %v742
          %v747 = vadd.f32 %v736, %v743
          %v748 = vadd.f32 %v737, %v744
          %s749 = sld [smem:[#allocation8 + $0x2b]]
          %s750 = smul.f32 %s749, %s321
          %v751 = vstv %s750
          %v752 = vmul.f32 %v751, %v329
          %v753 = vmul.f32 %v751, %v330
          %v754 = vmul.f32 %v751, %v331
          %v755 = vmul.f32 %v751, %v332
          %v756 = vadd.f32 %v745, %v752
          %v757 = vadd.f32 %v746, %v753
          %v758 = vadd.f32 %v747, %v754
          %v759 = vadd.f32 %v748, %v755
          %s760 = sld [smem:[#allocation8 + $0x34]]
          %s761 = smul.f32 %s760, %s321
          %v762 = vstv %s761
          %v763 = vmul.f32 %v762, %v330
          %v764 = vmul.f32 %v762, %v331
          %v765 = vmul.f32 %v762, %v332
          %v766 = vmul.f32 %v762, %v333
          %v767 = vadd.f32 %v756, %v763
          %v768 = vadd.f32 %v757, %v764
          %v769 = vadd.f32 %v758, %v765
          %v770 = vadd.f32 %v759, %v766
          %v775 = vrot.slane %v767, 1
          %v776 = vrot.slane %v768, 1
          %v777 = vrot.slane %v769, 1
          %v778 = vrot.slane %v770, 1
          %v783 = vsel %vm544, %v775, 0.0
          %v784 = vsel %vm544, %v776, 0.0
          %v785 = vsel %vm544, %v777, 0.0
          %v786 = vsel %vm544, %v778, 0.0
          %v787 = vadd.f32 %v708, %v783
          %v788 = vadd.f32 %v709, %v784
          %v789 = vadd.f32 %v710, %v785
          %v790 = vadd.f32 %v711, %v786
          %v791 = vadd.f32 %v570, %v787
          %v792 = vadd.f32 %v571, %v788
          %v793 = vadd.f32 %v572, %v789
          %v794 = vadd.f32 %v573, %v790
          %s795 = sld [smem:[#allocation8 + $0x2]]
          %v796 = vstv %s795
          %v797 = vmul.f32 %v796, %v322
          %v798 = vmul.f32 %v796, %v323
          %v799 = vmul.f32 %v796, %v324
          %v800 = vmul.f32 %v796, %v325
          %s801 = sld [smem:[#allocation8 + $0xb]]
          %v802 = vstv %s801
          %v803 = vmul.f32 %v802, %v323
          %v804 = vmul.f32 %v802, %v324
          %v805 = vmul.f32 %v802, %v325
          %v806 = vmul.f32 %v802, %v326
          %v807 = vadd.f32 %v797, %v803
          %v808 = vadd.f32 %v798, %v804
          %v809 = vadd.f32 %v799, %v805
          %v810 = vadd.f32 %v800, %v806
          %s811 = sld [smem:[#allocation8 + $0x14]]
          %v812 = vstv %s811
          %v813 = vmul.f32 %v812, %v324
          %v814 = vmul.f32 %v812, %v325
          %v815 = vmul.f32 %v812, %v326
          %v816 = vmul.f32 %v812, %v327
          %v817 = vadd.f32 %v807, %v813
          %v818 = vadd.f32 %v808, %v814
          %v819 = vadd.f32 %v809, %v815
          %v820 = vadd.f32 %v810, %v816
          %s821 = sld [smem:[#allocation8 + $0x1d]]
          %s822 = smul.f32 %s821, %s321
          %v823 = vstv %s822
          %v824 = vmul.f32 %v823, %v328
          %v825 = vmul.f32 %v823, %v329
          %v826 = vmul.f32 %v823, %v330
          %v827 = vmul.f32 %v823, %v331
          %v828 = vadd.f32 %v817, %v824
          %v829 = vadd.f32 %v818, %v825
          %v830 = vadd.f32 %v819, %v826
          %v831 = vadd.f32 %v820, %v827
          %s832 = sld [smem:[#allocation8 + $0x26]]
          %s833 = smul.f32 %s832, %s321
          %v834 = vstv %s833
          %v835 = vmul.f32 %v834, %v329
          %v836 = vmul.f32 %v834, %v330
          %v837 = vmul.f32 %v834, %v331
          %v838 = vmul.f32 %v834, %v332
          %v839 = vadd.f32 %v828, %v835
          %v840 = vadd.f32 %v829, %v836
          %v841 = vadd.f32 %v830, %v837
          %v842 = vadd.f32 %v831, %v838
          %s843 = sld [smem:[#allocation8 + $0x2f]]
          %s844 = smul.f32 %s843, %s321
          %v845 = vstv %s844
          %v846 = vmul.f32 %v845, %v330
          %v847 = vmul.f32 %v845, %v331
          %v848 = vmul.f32 %v845, %v332
          %v849 = vmul.f32 %v845, %v333
          %v850 = vadd.f32 %v839, %v846
          %v851 = vadd.f32 %v840, %v847
          %v852 = vadd.f32 %v841, %v848
          %v853 = vadd.f32 %v842, %v849
          %v858 = vrot.slane %v850, 7
          %v859 = vrot.slane %v851, 7
          %v860 = vrot.slane %v852, 7
          %v861 = vrot.slane %v853, 7
          %v866 = vsel %vm405, 0.0, %v858
          %v867 = vsel %vm405, 0.0, %v859
          %v868 = vsel %vm405, 0.0, %v860
          %v869 = vsel %vm405, 0.0, %v861
          %s870 = sld [smem:[#allocation8 + $0x5]]
          %v871 = vstv %s870
          %v872 = vmul.f32 %v871, %v322
          %v873 = vmul.f32 %v871, %v323
          %v874 = vmul.f32 %v871, %v324
          %v875 = vmul.f32 %v871, %v325
          %s876 = sld [smem:[#allocation8 + $0xe]]
          %v877 = vstv %s876
          %v878 = vmul.f32 %v877, %v323
          %v879 = vmul.f32 %v877, %v324
          %v880 = vmul.f32 %v877, %v325
          %v881 = vmul.f32 %v877, %v326
          %v882 = vadd.f32 %v872, %v878
          %v883 = vadd.f32 %v873, %v879
          %v884 = vadd.f32 %v874, %v880
          %v885 = vadd.f32 %v875, %v881
          %s886 = sld [smem:[#allocation8 + $0x17]]
          %v887 = vstv %s886
          %v888 = vmul.f32 %v887, %v324
          %v889 = vmul.f32 %v887, %v325
          %v890 = vmul.f32 %v887, %v326
          %v891 = vmul.f32 %v887, %v327
          %v892 = vadd.f32 %v882, %v888
          %v893 = vadd.f32 %v883, %v889
          %v894 = vadd.f32 %v884, %v890
          %v895 = vadd.f32 %v885, %v891
          %s896 = sld [smem:[#allocation8 + $0x20]]
          %s897 = smul.f32 %s896, %s321
          %v898 = vstv %s897
          %v899 = vmul.f32 %v898, %v328
          %v900 = vmul.f32 %v898, %v329
          %v901 = vmul.f32 %v898, %v330
          %v902 = vmul.f32 %v898, %v331
          %v903 = vadd.f32 %v892, %v899
          %v904 = vadd.f32 %v893, %v900
          %v905 = vadd.f32 %v894, %v901
          %v906 = vadd.f32 %v895, %v902
          %s907 = sld [smem:[#allocation8 + $0x29]]
          %s908 = smul.f32 %s907, %s321
          %v909 = vstv %s908
          %v910 = vmul.f32 %v909, %v329
          %v911 = vmul.f32 %v909, %v330
          %v912 = vmul.f32 %v909, %v331
          %v913 = vmul.f32 %v909, %v332
          %v914 = vadd.f32 %v903, %v910
          %v915 = vadd.f32 %v904, %v911
          %v916 = vadd.f32 %v905, %v912
          %v917 = vadd.f32 %v906, %v913
          %s918 = sld [smem:[#allocation8 + $0x32]]
          %s919 = smul.f32 %s918, %s321
          %v920 = vstv %s919
          %v921 = vmul.f32 %v920, %v330
          %v922 = vmul.f32 %v920, %v331
          %v923 = vmul.f32 %v920, %v332
          %v924 = vmul.f32 %v920, %v333
          %v925 = vadd.f32 %v914, %v921
          %v926 = vadd.f32 %v915, %v922
          %v927 = vadd.f32 %v916, %v923
          %v928 = vadd.f32 %v917, %v924
          %v929 = vadd.f32 %v866, %v925
          %v930 = vadd.f32 %v867, %v926
          %v931 = vadd.f32 %v868, %v927
          %v932 = vadd.f32 %v869, %v928
          %s933 = sld [smem:[#allocation8 + $0x8]]
          %v934 = vstv %s933
          %v935 = vmul.f32 %v934, %v322
          %v936 = vmul.f32 %v934, %v323
          %v937 = vmul.f32 %v934, %v324
          %v938 = vmul.f32 %v934, %v325
          %s939 = sld [smem:[#allocation8 + $0x11]]
          %v940 = vstv %s939
          %v941 = vmul.f32 %v940, %v323
          %v942 = vmul.f32 %v940, %v324
          %v943 = vmul.f32 %v940, %v325
          %v944 = vmul.f32 %v940, %v326
          %v945 = vadd.f32 %v935, %v941
          %v946 = vadd.f32 %v936, %v942
          %v947 = vadd.f32 %v937, %v943
          %v948 = vadd.f32 %v938, %v944
          %s949 = sld [smem:[#allocation8 + $0x1a]]
          %v950 = vstv %s949
          %v951 = vmul.f32 %v950, %v324
          %v952 = vmul.f32 %v950, %v325
          %v953 = vmul.f32 %v950, %v326
          %v954 = vmul.f32 %v950, %v327
          %v955 = vadd.f32 %v945, %v951
          %v956 = vadd.f32 %v946, %v952
          %v957 = vadd.f32 %v947, %v953
          %v958 = vadd.f32 %v948, %v954
          %s959 = sld [smem:[#allocation8 + $0x23]]
          %s960 = smul.f32 %s959, %s321
          %v961 = vstv %s960
          %v962 = vmul.f32 %v961, %v328
          %v963 = vmul.f32 %v961, %v329
          %v964 = vmul.f32 %v961, %v330
          %v965 = vmul.f32 %v961, %v331
          %v966 = vadd.f32 %v955, %v962
          %v967 = vadd.f32 %v956, %v963
          %v968 = vadd.f32 %v957, %v964
          %v969 = vadd.f32 %v958, %v965
          %s970 = sld [smem:[#allocation8 + $0x2c]]
          %s971 = smul.f32 %s970, %s321
          %v972 = vstv %s971
          %v973 = vmul.f32 %v972, %v329
          %v974 = vmul.f32 %v972, %v330
          %v975 = vmul.f32 %v972, %v331
          %v976 = vmul.f32 %v972, %v332
          %v977 = vadd.f32 %v966, %v973
          %v978 = vadd.f32 %v967, %v974
          %v979 = vadd.f32 %v968, %v975
          %v980 = vadd.f32 %v969, %v976
          %s981 = sld [smem:[#allocation8 + $0x35]]
          %s982 = smul.f32 %s981, %s321
          %v983 = vstv %s982
          %v984 = vmul.f32 %v983, %v330
          %v985 = vmul.f32 %v983, %v331
          %v986 = vmul.f32 %v983, %v332
          %v987 = vmul.f32 %v983, %v333
          %v988 = vadd.f32 %v977, %v984
          %v989 = vadd.f32 %v978, %v985
          %v990 = vadd.f32 %v979, %v986
          %v991 = vadd.f32 %v980, %v987
          %v996 = vrot.slane %v988, 1
          %v997 = vrot.slane %v989, 1
          %v998 = vrot.slane %v990, 1
          %v999 = vrot.slane %v991, 1
          %v1004 = vsel %vm544, %v996, 0.0
          %v1005 = vsel %vm544, %v997, 0.0
          %v1006 = vsel %vm544, %v998, 0.0
          %v1007 = vsel %vm544, %v999, 0.0
          %v1008 = vadd.f32 %v929, %v1004
          %v1009 = vadd.f32 %v930, %v1005
          %v1010 = vadd.f32 %v931, %v1006
          %v1011 = vadd.f32 %v932, %v1007
          %1016 = vrot.lane.b32.xlu0 %v1008, 127
          %v1017 = vpop.permute.xlu0 %1016
          %1018 = vrot.lane.b32.xlu0 %v1009, 127
          %v1019 = vpop.permute.xlu0 %1018
          %1020 = vrot.lane.b32.xlu0 %v1010, 127
          %v1021 = vpop.permute.xlu0 %1020
          %1022 = vrot.lane.b32.xlu0 %v1011, 127
          %v1023 = vpop.permute.xlu0 %1022
          %vm1028 = vcmask 121856
          %v1029 = vsel %vm1028, %v1017, 0.0
          %v1030 = vsel %vm1028, %v1019, 0.0
          %v1031 = vsel %vm1028, %v1021, 0.0
          %v1032 = vsel %vm1028, %v1023, 0.0
          %v1033 = vadd.f32 %v791, %v1029
          %v1034 = vadd.f32 %v792, %v1030
          %v1035 = vadd.f32 %v793, %v1031
          %v1036 = vadd.f32 %v794, %v1032
          %s1037 = sld [smem:[#allocation7]]
          %v1038 = vstv %s1037
          %v1039 = vadd.f32 %v1033, %v1038
          %v1040 = vadd.f32 %v1034, %v1038
          %v1041 = vadd.f32 %v1035, %v1038
          %v1042 = vadd.f32 %v1036, %v1038
          %v1043 = vmax.f32 %v1039, 0.0
          %v1044 = vmax.f32 %v1040, 0.0
          %v1045 = vmax.f32 %v1041, 0.0
          %v1046 = vmax.f32 %v1042, 0.0
          %vm1047 = vcmask 130048
          %1048 = vst.msk [vmem:[%s235] sm:$0xff] %vm1047, %v1043
          %1049 = vst.msk [vmem:[%s235 + $0x8] sm:$0xff] %vm1047, %v1044
          %1050 = vst.msk [vmem:[%s235 + $0x10] sm:$0xff] %vm1047, %v1045
          %1051 = vst.msk [vmem:[%s235 + $0x18] sm:$0xff] %vm1047, %v1046
        $region56: #{tpu_custom_call.1} parent=31 // pred_fallthru
          _
        %s1052 = sand.u32 %s128, 1
        %s1053 = scalar_lea.sflag [#allocation10], %s1052
        %s1054 = sand.u32 %s128, 1
        %s1055 = smul.addr %s1054, 32
        %s1056 = scalar_lea.vmem [#allocation13], %s1055
        // Predicated region
        $region57: #{tpu_custom_call.1} parent=31 // pred_check
          %p1057 = pneg %p138
        $region58: #{tpu_custom_call.1} parent=31 // pred_check_branch
          %1059 = sbr.rel (%p1057) target = $region60
        $region59: #{tpu_custom_call.1} parent=31 // pred_region
          %s1060 = sld [smem:[#allocation5 + %s39]]
          %s1061 = smul.u32 4, %s38
          %s1063 = ssub.s32 512, 512
          %1064 = vsyncadd %s1053, %s1063
          %s1065 = smul.addr %s1060, 4
          %s1066 = sadd.s32 %s1061, %s1065
          %s1067 = smul.addr %s1066, 128
          %s1068 = scalar_lea.hbm %s5, %s1067
          %s1069 = sshll.u32 %s1056, 4
          %s1070 = int_to_ptr.vmem [resolvable:$true] %s1069
          %1075 = dma.vmem_to_hbm [thread:$0]  %s1070, 512, %s1068, %s1053, 128, 128, 8
        $region60: #{tpu_custom_call.1} parent=31 // pred_fallthru
          _
      $region32: #{tpu_custom_call.1} parent=5 // pred_fallthru
        _
      %p1076 = scmp.le.s32.totalorder 2, %s29
      // Predicated region
      $region61: #{tpu_custom_call.1} parent=5 // pred_check
        %p1077 = pneg %p1076
      $region62: #{tpu_custom_call.1} parent=5 // pred_check_branch
        %1079 = sbr.rel (%p1077) target = $region64
      $region63: #{tpu_custom_call.1} parent=5 // pred_region
        %s1080 = ssub.s32 %s29, 2
        // Predicated region
        $region65: #{tpu_custom_call.1} parent=63 // pred_check
          %p1081 = pneg %p144
        $region66: #{tpu_custom_call.1} parent=63 // pred_check_branch
          %1083 = sbr.rel (%p1081) target = $region68
        $region67: #{tpu_custom_call.1} parent=63 // pred_region
          %s1084 = sand.u32 %s129, 1
          %s1085 = scalar_lea.sflag [#allocation10], %s1084
          %s1086 = sand.u32 %s129, 1
          %s1087 = smul.addr %s1086, 32
          %s1088 = scalar_lea.vmem [#allocation13], %s1087
          %1089 = dma.done %s1085, 512
        $region68: #{tpu_custom_call.1} parent=63 // pred_fallthru
          _
      $region64: #{tpu_custom_call.1} parent=5 // pred_fallthru
        _
    $region6: #{tpu_custom_call.1} parent=1 // loop_footer
      %s33 = sadd.s32 1, %s29
    $region7: #{tpu_custom_call.1} parent=1 // loop_footer_branch
      %28 = sbr.rel target = $region3
    $region8: #{tpu_custom_call.1} parent=1 // loop_exit
      _
    %1090 = vsyncpa [#allocation9], 1
    %s1091 = scalar_lea.sflag [#allocation9], 1
    %1092 = vsyncpa %s1091, 1
    %1093 = vsyncpa [#allocation10], 1
    %s1094 = scalar_lea.sflag [#allocation10], 1
    %1095 = vsyncpa %s1094, 1
    %1096 = vsyncpa [#allocation11], 1
    %s1097 = scalar_lea.sflag [#allocation11], 1
    %1098 = vsyncpa %s1097, 1

</llo_original>
